<compile_context>
chip_gen: v5e
topology: v5e:2x2
jax: 0.10.0
libtpu: 0.0.40
codegen_flags: <defaults>
</compile_context>

<pallas_src>
import math

import jax
import jax.numpy as jnp
from jax.experimental import pallas as pl
from jax.experimental.pallas import tpu as pltpu


def _round_up(x, m):
    return (x + m - 1) // m * m


def _cdiv(a, b):
    return (a + b - 1) // b


# Row layout of the packed (8, E) bias / norm block.
_B_TEXT, _B_IMG, _N1W, _N1B, _N2W, _N2B, _FF2B = 0, 1, 2, 3, 4, 5, 6


def decoder_kernel(xt_ref, xi_ref, wt_ref, wi_ref, ff1w_ref, ff2w_ref,
                   vec_ref, ff1b_ref, out_ref):
    bf16 = jnp.bfloat16
    f32 = jnp.float32

    def row(i):                       # (1, E) f32 slice of the packed bias block
        return vec_ref[i:i + 1, :]

    def ln(x, w, b, eps=1e-5):        # f32 layernorm (PyTorch LayerNorm, eps=1e-5)
        mean = jnp.mean(x, axis=-1, keepdims=True)
        var = jnp.mean(jnp.square(x - mean), axis=-1, keepdims=True)
        return (x - mean) * jax.lax.rsqrt(var + eps) * w + b

    # Text stream: q_text + attention_text folded into one (E,E) bf16 weight.
    z_t = jnp.dot(xt_ref[...], wt_ref[...], preferred_element_type=f32) + row(_B_TEXT)
    x = ln(z_t, row(_N1W), row(_N1B))

    # Image stream: attention_immage only (its query path is algebraically dead).
    a_i = jnp.dot(xi_ref[...], wi_ref[...], preferred_element_type=f32) + row(_B_IMG)
    y = ln(a_i + x, row(_N1W), row(_N1B))

    # Feed-forward (bf16 MXU operands, f32 accumulation / epilogue).
    h = jnp.maximum(
        jnp.dot(y.astype(bf16), ff1w_ref[...], preferred_element_type=f32)
        + ff1b_ref[...], 0.0)
    ff = jnp.dot(h.astype(bf16), ff2w_ref[...], preferred_element_type=f32) + row(_FF2B)

    # Dropout == identity (eval mode).
    out_ref[...] = ln(ff + y, row(_N2W), row(_N2B))


def fuse_decoder_params(params, heads):
    """Host-side exact weight fusion (f32 composition, cast once to bf16)."""
    f32 = jnp.float32
    bf16 = jnp.bfloat16
    hi = jax.lax.Precision.HIGHEST

    def mm(a, b):
        return jnp.dot(a.astype(f32), b.astype(f32), precision=hi)

    w_attn = float(heads) * mm(mm(params["fc_w"], params["v_w"]), params["fo_w"])
    b_attn = mm(float(heads) * (mm(params["fc_b"], params["v_w"]) + params["v_b"]),
                params["fo_w"]) + params["fo_b"]

    return dict(
        w_text=(params["fc_w"] + w_attn).astype(bf16),   # fc + attention (text residual fused)
        w_img=w_attn.astype(bf16),                       # attention only (image stream)
        b_text=(params["fc_b"] + b_attn).astype(f32),
        b_img=b_attn.astype(f32),
        ff1_w=params["ff1_w"].astype(bf16), ff1_b=params["ff1_b"].astype(f32),
        ff2_w=params["ff2_w"].astype(bf16), ff2_b=params["ff2_b"].astype(f32),
        n1_w=params["n1_w"].astype(f32), n1_b=params["n1_b"].astype(f32),
        n2_w=params["n2_w"].astype(f32), n2_b=params["n2_b"].astype(f32),
    )


def decoder_forward(x_text, x_img, mask, params, *, heads, tile_n=512):
    # `mask` is accepted for API parity but has no effect on the output: the
    # softmax it masks is fully contracted by the reference einsum (see header).
    del mask
    n, e = x_text.shape

    fused = fuse_decoder_params(params, heads)
    hidden = fused["ff1_w"].shape[1]

    # Packed (8, E) bias / norm block (one aligned DMA instead of 7 tiny ones).
    vec = jnp.concatenate(
        [fused["b_text"], fused["b_img"],
         fused["n1_w"], fused["n1_b"],
         fused["n2_w"], fused["n2_b"],
         fused["ff2_b"], jnp.zeros((1, e), jnp.float32)], axis=0)

    # --- row tiling: minimal padding (bf16 sublane packing), balanced tiles,
    #     and >= 2 grid steps for large n so the "parallel" axis can shard
    #     across v7x's two TensorCores. ---
    align = 16
    n_min = _round_up(n, align)
    num_tiles = max(1, _cdiv(n_min, tile_n))
    if num_tiles == 1 and n_min >= 256:
        num_tiles = 2                      # v7x megacore: keep both TCs busy
    tile = _round_up(_cdiv(n_min, num_tiles), align)
    n_pad = num_tiles * tile

    def prep(x):
        x = x.astype(jnp.float32)
        if n_pad != n:
            x = jnp.pad(x, ((0, n_pad - n), (0, 0)))
        return x.astype(jnp.bfloat16)      # bf16 activations: MXU operands only

    xt = prep(x_text)
    xi = prep(x_img)

    def build_and_run(single_buffer_weights):
        const_kwargs = (dict(pipeline_mode=pl.Buffered(1))
                        if single_buffer_weights else {})

        def const(shape):
            # Constant index_map: block never changes -> DMA'd once, resident
            # in VMEM across all row tiles.
            return pl.BlockSpec(shape, lambda i: (0,) * len(shape), **const_kwargs)

        row_spec = pl.BlockSpec((tile, e), lambda i: (i, 0))
        in_specs = [
            row_spec, row_spec,                         # x_text, x_img (bf16)
            const((e, e)), const((e, e)),               # fused text / image weights
            const((e, hidden)), const((hidden, e)),     # ff1_w, ff2_w
            const((8, e)), const((1, hidden)),          # packed biases/norms, ff1_b
        ]
        return pl.pallas_call(
            decoder_kernel,
            out_shape=jax.ShapeDtypeStruct((n_pad, e), jnp.float32),
            grid_spec=pltpu.PrefetchScalarGridSpec(
                num_scalar_prefetch=0,
                grid=(num_tiles,),
                in_specs=in_specs,
                out_specs=pl.BlockSpec((tile, e), lambda i: (i, 0)),
            ),
            compiler_params=pltpu.CompilerParams(
                dimension_semantics=("parallel",),      # shards row tiles across TCs (v7x)
                vmem_limit_bytes=32 * 1024 * 1024,      # ample headroom even on v7x (64 MiB/TC)
            ),
        )(xt, xi, fused["w_text"], fused["w_img"],
          fused["ff1_w"], fused["ff2_w"], vec, fused["ff1_b"])

    try:
        out = build_and_run(True)
    except Exception:
        # pl.Buffered(1) (single-buffered constant blocks) not supported on this
        # jax version -> fall back to the default double-buffered pipeline.
        out = build_and_run(False)
    return out[:n]


def fused_reference(x_text, x_img, fp):
    """Plain-JAX replica of exactly what the kernel computes (tight check)."""
    bf16 = jnp.bfloat16

    def mm(x, w):
        return jnp.dot(x.astype(bf16), w, preferred_element_type=jnp.float32)

    def ln(x, w, b, eps=1e-5):
        mean = x.mean(-1, keepdims=True)
        var = ((x - mean) ** 2).mean(-1, keepdims=True)
        return (x - mean) * jax.lax.rsqrt(var + eps) * w + b

    z_t = mm(x_text, fp["w_text"]) + fp["b_text"]
    x = ln(z_t, fp["n1_w"], fp["n1_b"])
    a_i = mm(x_img, fp["w_img"]) + fp["b_img"]
    y = ln(a_i + x, fp["n1_w"], fp["n1_b"])
    h = jnp.maximum(mm(y, fp["ff1_w"]) + fp["ff1_b"], 0.0)
    ff = mm(h, fp["ff2_w"]) + fp["ff2_b"]
    return ln(ff + y, fp["n2_w"], fp["n2_b"])


def reference_forward(x_text, x_img, mask, p, *, heads):
    """Faithful f32 replica of the PyTorch Decoder.forward (eval mode),
    including the full keys/queries/mask/softmax path."""
    n, e = x_text.shape
    hd = e // heads
    hi = jax.lax.Precision.HIGHEST

    def lin(x, w, b):
        return jnp.dot(x, w, precision=hi) + b

    def ln(x, w, b, eps=1e-5):
        mean = x.mean(-1, keepdims=True)
        var = ((x - mean) ** 2).mean(-1, keepdims=True)
        return (x - mean) * jax.lax.rsqrt(var + eps) * w + b

    def attn(v, k, q):
        vals = lin(v, p["v_w"], p["v_b"]).reshape(n, heads, hd)
        keys = lin(k, p["k_w"], p["k_b"]).reshape(n, heads, hd)
        qrys = lin(q, p["q_w"], p["q_b"]).reshape(n, heads, hd)
        energy = qrys * keys
        energy = jnp.where(mask == 0, -1e20, energy)
        a = jax.nn.softmax(energy / math.sqrt(e), axis=2)
        out = jnp.einsum("nql,nhd->nhd", a, vals).reshape(n, e)
        return lin(out, p["fo_w"], p["fo_b"])

    qt = lin(x_text, p["fc_w"], p["fc_b"])
    qi = lin(x_img, p["fc_w"], p["fc_b"])
    at = attn(qt, qt, qt)
    x = ln(at + qt, p["n1_w"], p["n1_b"])
    ai = attn(qi, qi, x)
    y = ln(ai + x, p["n1_w"], p["n1_b"])
    h = jax.nn.relu(lin(y, p["ff1_w"], p["ff1_b"]))
    ff = lin(h, p["ff2_w"], p["ff2_b"])
    return ln(ff + y, p["n2_w"], p["n2_b"])


def init_params(key, embed, hidden):
    """Deterministic init; Linear weights stored as (in, out), biases as (1, out)."""
    ks = jax.random.split(key, 16)

    def lin(kw, kb, fan_in, fan_out):
        bound = 1.0 / math.sqrt(fan_in)
        w = jax.random.uniform(kw, (fan_in, fan_out), jnp.float32, -bound, bound)
        b = jax.random.uniform(kb, (1, fan_out), jnp.float32, -bound, bound)
        return w, b

    p = {}
    p["fc_w"], p["fc_b"] = lin(ks[0], ks[1], embed, embed)
    p["v_w"], p["v_b"] = lin(ks[2], ks[3], embed, embed)
    p["k_w"], p["k_b"] = lin(ks[4], ks[5], embed, embed)      # used only by the reference
    p["q_w"], p["q_b"] = lin(ks[6], ks[7], embed, embed)      # used only by the reference
    p["fo_w"], p["fo_b"] = lin(ks[8], ks[9], embed, embed)
    p["ff1_w"], p["ff1_b"] = lin(ks[10], ks[11], embed, hidden)
    p["ff2_w"], p["ff2_b"] = lin(ks[12], ks[13], hidden, embed)
    p["n1_w"] = jnp.ones((1, embed), jnp.float32) + 0.1 * jax.random.normal(ks[14], (1, embed))
    p["n1_b"] = 0.1 * jax.random.normal(ks[15], (1, embed))
    p["n2_w"] = jnp.ones((1, embed), jnp.float32)
    p["n2_b"] = jnp.zeros((1, embed), jnp.float32)
    return p


if __name__ == "__main__":
    N, EMBED, HEADS, FWD_EXP = 24, 128, 4, 2
    HIDDEN = FWD_EXP * EMBED
    HEAD_DIM = EMBED // HEADS

    key = jax.random.PRNGKey(0)
    k_xt, k_xi, k_m, k_p = jax.random.split(key, 4)

    x_text = jax.random.normal(k_xt, (N, EMBED), jnp.float32)
    x_img = jax.random.normal(k_xi, (N, EMBED), jnp.float32)
    mask = (jax.random.uniform(k_m, (N, HEADS, HEAD_DIM)) > 0.2).astype(jnp.float32)
    params = init_params(k_p, EMBED, HIDDEN)

    # tile_n=16 -> 2 row tiles: exercises the grid, resident weights and the
    # "parallel" axis; default tile_n exercises the single-tile path.
    out = decoder_forward(x_text, x_img, mask, params, heads=HEADS, tile_n=16)
    out = jax.block_until_ready(out)
    assert out.shape == (N, EMBED) and out.dtype == jnp.float32

    # (a) Implementation exactness vs. a reference doing the identical fused
    #     bf16 matmuls / f32 epilogue.
    fp = fuse_decoder_params(params, HEADS)
    ref_fused = fused_reference(x_text, x_img, fp)
    assert jnp.allclose(out, ref_fused, atol=3e-3, rtol=3e-3), (
        f"fused-reference mismatch: {jnp.max(jnp.abs(out - ref_fused))}"
    )

    # (b) Fidelity vs. the fully-f32 PyTorch-faithful reference (full
    #     keys/queries/mask/softmax path); tolerance covers bf16 rounding only.
    ref_f32 = reference_forward(x_text, x_img, mask, params, heads=HEADS)
    assert jnp.allclose(out, ref_f32, atol=2.5e-2, rtol=2.5e-2), (
        f"f32 reference mismatch: {jnp.max(jnp.abs(out - ref_f32))}"
    )

    # Single-tile (default tile_n) path must agree as well.
    out_single = decoder_forward(x_text, x_img, mask, params, heads=HEADS)
    out_single = jax.block_until_ready(out_single)
    assert jnp.allclose(out_single, ref_fused, atol=3e-3, rtol=3e-3), (
        f"single-tile mismatch: {jnp.max(jnp.abs(out_single - ref_fused))}"
    )

    print("KERNEL_OK")
</pallas_src>

<mosaic_0001>
module attributes {stable_mosaic.version = 11 : i64} {
  func.func @decoder_kernel(%arg0: i32, %arg1: memref<16x128xbf16, #tpu.memory_space<vmem>>, %arg2: memref<16x128xbf16, #tpu.memory_space<vmem>>, %arg3: memref<128x128xbf16, #tpu.memory_space<vmem>>, %arg4: memref<128x128xbf16, #tpu.memory_space<vmem>>, %arg5: memref<128x256xbf16, #tpu.memory_space<vmem>>, %arg6: memref<256x128xbf16, #tpu.memory_space<vmem>>, %arg7: memref<8x128xf32, #tpu.memory_space<vmem>>, %arg8: memref<1x256xf32, #tpu.memory_space<vmem>>, %arg9: memref<16x128xf32, #tpu.memory_space<vmem>>) attributes {dimension_semantics = [#tpu.dimension_semantics<parallel>], iteration_bounds = array<i64: 2>, scalar_prefetch = 0 : i64, scratch_operands = 0 : i64, tpu.core_type = #tpu.core_type<tc>, window_params = [{transform_indices = @transform_0, window_bounds = array<i64: 16, 128>}, {transform_indices = @transform_1, window_bounds = array<i64: 16, 128>}, {pipeline_mode = #tpu.pipeline_mode<synchronous>, transform_indices = @transform_2, window_bounds = array<i64: 128, 128>}, {pipeline_mode = #tpu.pipeline_mode<synchronous>, transform_indices = @transform_3, window_bounds = array<i64: 128, 128>}, {pipeline_mode = #tpu.pipeline_mode<synchronous>, transform_indices = @transform_4, window_bounds = array<i64: 128, 256>}, {pipeline_mode = #tpu.pipeline_mode<synchronous>, transform_indices = @transform_5, window_bounds = array<i64: 256, 128>}, {pipeline_mode = #tpu.pipeline_mode<synchronous>, transform_indices = @transform_6, window_bounds = array<i64: 8, 128>}, {pipeline_mode = #tpu.pipeline_mode<synchronous>, transform_indices = @transform_7, window_bounds = array<i64: 1, 256>}, {transform_indices = @transform_8, window_bounds = array<i64: 16, 128>}]} {
    %c0 = arith.constant 0 : index
    %c0_0 = arith.constant 0 : index
    %0 = vector.load %arg1[%c0, %c0_0] : memref<16x128xbf16, #tpu.memory_space<vmem>>, vector<16x128xbf16>
    %c0_1 = arith.constant 0 : index
    %c0_2 = arith.constant 0 : index
    %1 = vector.load %arg3[%c0_1, %c0_2] : memref<128x128xbf16, #tpu.memory_space<vmem>>, vector<128x128xbf16>
    %cst = arith.constant dense<0.000000e+00> : vector<16x128xf32>
    %2 = tpu.matmul %0, %1, %cst {dimension_numbers = #tpu.dot_dimension_numbers<[1], [0], [0], [1], [0, 0, 1, 1], [], []>} : vector<16x128xbf16>, vector<128x128xbf16>, vector<16x128xf32> -> vector<16x128xf32>
    %c0_3 = arith.constant 0 : index
    %c0_4 = arith.constant 0 : index
    %3 = vector.load %arg7[%c0_3, %c0_4] : memref<8x128xf32, #tpu.memory_space<vmem>>, vector<1x128xf32>
    %4 = vector.broadcast %3 : vector<1x128xf32> to vector<16x128xf32>
    %5 = arith.addf %2, %4 : vector<16x128xf32>
    %c2 = arith.constant 2 : index
    %c0_5 = arith.constant 0 : index
    %6 = vector.load %arg7[%c2, %c0_5] : memref<8x128xf32, #tpu.memory_space<vmem>>, vector<1x128xf32>
    %c3 = arith.constant 3 : index
    %c0_6 = arith.constant 0 : index
    %7 = vector.load %arg7[%c3, %c0_6] : memref<8x128xf32, #tpu.memory_space<vmem>>, vector<1x128xf32>
    %cst_7 = arith.constant dense<0.000000e+00> : vector<16xf32>
    %8 = vector.multi_reduction <add>, %5, %cst_7 [1] : vector<16x128xf32> to vector<16xf32>
    %9 = vector.shape_cast %8 : vector<16xf32> to vector<16x1xf32>
    %cst_8 = arith.constant 1.280000e+02 : f32
    %10 = vector.broadcast %cst_8 : f32 to vector<16x1xf32>
    %11 = arith.divf %9, %10 : vector<16x1xf32>
    %12 = vector.broadcast %11 : vector<16x1xf32> to vector<16x128xf32>
    %13 = arith.subf %5, %12 : vector<16x128xf32>
    %14 = arith.mulf %13, %13 : vector<16x128xf32>
    %cst_9 = arith.constant dense<0.000000e+00> : vector<16xf32>
    %15 = vector.multi_reduction <add>, %14, %cst_9 [1] : vector<16x128xf32> to vector<16xf32>
    %16 = vector.shape_cast %15 : vector<16xf32> to vector<16x1xf32>
    %cst_10 = arith.constant 1.280000e+02 : f32
    %17 = vector.broadcast %cst_10 : f32 to vector<16x1xf32>
    %18 = arith.divf %16, %17 : vector<16x1xf32>
    %19 = vector.broadcast %11 : vector<16x1xf32> to vector<16x128xf32>
    %20 = arith.subf %5, %19 : vector<16x128xf32>
    %cst_11 = arith.constant 9.99999974E-6 : f32
    %21 = vector.broadcast %cst_11 : f32 to vector<16x1xf32>
    %22 = arith.addf %18, %21 : vector<16x1xf32>
    %23 = math.rsqrt %22 : vector<16x1xf32>
    %24 = vector.broadcast %23 : vector<16x1xf32> to vector<16x128xf32>
    %25 = arith.mulf %20, %24 : vector<16x128xf32>
    %26 = vector.broadcast %6 : vector<1x128xf32> to vector<16x128xf32>
    %27 = arith.mulf %25, %26 : vector<16x128xf32>
    %28 = vector.broadcast %7 : vector<1x128xf32> to vector<16x128xf32>
    %29 = arith.addf %27, %28 : vector<16x128xf32>
    %c0_12 = arith.constant 0 : index
    %c0_13 = arith.constant 0 : index
    %30 = vector.load %arg2[%c0_12, %c0_13] : memref<16x128xbf16, #tpu.memory_space<vmem>>, vector<16x128xbf16>
    %c0_14 = arith.constant 0 : index
    %c0_15 = arith.constant 0 : index
    %31 = vector.load %arg4[%c0_14, %c0_15] : memref<128x128xbf16, #tpu.memory_space<vmem>>, vector<128x128xbf16>
    %cst_16 = arith.constant dense<0.000000e+00> : vector<16x128xf32>
    %32 = tpu.matmul %30, %31, %cst_16 {dimension_numbers = #tpu.dot_dimension_numbers<[1], [0], [0], [1], [0, 0, 1, 1], [], []>} : vector<16x128xbf16>, vector<128x128xbf16>, vector<16x128xf32> -> vector<16x128xf32>
    %c1 = arith.constant 1 : index
    %c0_17 = arith.constant 0 : index
    %33 = vector.load %arg7[%c1, %c0_17] : memref<8x128xf32, #tpu.memory_space<vmem>>, vector<1x128xf32>
    %34 = vector.broadcast %33 : vector<1x128xf32> to vector<16x128xf32>
    %35 = arith.addf %32, %34 : vector<16x128xf32>
    %36 = arith.addf %35, %29 : vector<16x128xf32>
    %c2_18 = arith.constant 2 : index
    %c0_19 = arith.constant 0 : index
    %37 = vector.load %arg7[%c2_18, %c0_19] : memref<8x128xf32, #tpu.memory_space<vmem>>, vector<1x128xf32>
    %c3_20 = arith.constant 3 : index
    %c0_21 = arith.constant 0 : index
    %38 = vector.load %arg7[%c3_20, %c0_21] : memref<8x128xf32, #tpu.memory_space<vmem>>, vector<1x128xf32>
    %cst_22 = arith.constant dense<0.000000e+00> : vector<16xf32>
    %39 = vector.multi_reduction <add>, %36, %cst_22 [1] : vector<16x128xf32> to vector<16xf32>
    %40 = vector.shape_cast %39 : vector<16xf32> to vector<16x1xf32>
    %cst_23 = arith.constant 1.280000e+02 : f32
    %41 = vector.broadcast %cst_23 : f32 to vector<16x1xf32>
    %42 = arith.divf %40, %41 : vector<16x1xf32>
    %43 = vector.broadcast %42 : vector<16x1xf32> to vector<16x128xf32>
    %44 = arith.subf %36, %43 : vector<16x128xf32>
    %45 = arith.mulf %44, %44 : vector<16x128xf32>
    %cst_24 = arith.constant dense<0.000000e+00> : vector<16xf32>
    %46 = vector.multi_reduction <add>, %45, %cst_24 [1] : vector<16x128xf32> to vector<16xf32>
    %47 = vector.shape_cast %46 : vector<16xf32> to vector<16x1xf32>
    %cst_25 = arith.constant 1.280000e+02 : f32
    %48 = vector.broadcast %cst_25 : f32 to vector<16x1xf32>
    %49 = arith.divf %47, %48 : vector<16x1xf32>
    %50 = vector.broadcast %42 : vector<16x1xf32> to vector<16x128xf32>
    %51 = arith.subf %36, %50 : vector<16x128xf32>
    %cst_26 = arith.constant 9.99999974E-6 : f32
    %52 = vector.broadcast %cst_26 : f32 to vector<16x1xf32>
    %53 = arith.addf %49, %52 : vector<16x1xf32>
    %54 = math.rsqrt %53 : vector<16x1xf32>
    %55 = vector.broadcast %54 : vector<16x1xf32> to vector<16x128xf32>
    %56 = arith.mulf %51, %55 : vector<16x128xf32>
    %57 = vector.broadcast %37 : vector<1x128xf32> to vector<16x128xf32>
    %58 = arith.mulf %56, %57 : vector<16x128xf32>
    %59 = vector.broadcast %38 : vector<1x128xf32> to vector<16x128xf32>
    %60 = arith.addf %58, %59 : vector<16x128xf32>
    %61 = arith.truncf %60 : vector<16x128xf32> to vector<16x128xbf16>
    %c0_27 = arith.constant 0 : index
    %c0_28 = arith.constant 0 : index
    %62 = vector.load %arg5[%c0_27, %c0_28] : memref<128x256xbf16, #tpu.memory_space<vmem>>, vector<128x256xbf16>
    %cst_29 = arith.constant dense<0.000000e+00> : vector<16x256xf32>
    %63 = tpu.matmul %61, %62, %cst_29 {dimension_numbers = #tpu.dot_dimension_numbers<[1], [0], [0], [1], [0, 0, 1, 1], [], []>} : vector<16x128xbf16>, vector<128x256xbf16>, vector<16x256xf32> -> vector<16x256xf32>
    %c0_30 = arith.constant 0 : index
    %c0_31 = arith.constant 0 : index
    %64 = vector.load %arg8[%c0_30, %c0_31] : memref<1x256xf32, #tpu.memory_space<vmem>>, vector<1x256xf32>
    %65 = vector.broadcast %64 : vector<1x256xf32> to vector<16x256xf32>
    %66 = arith.addf %63, %65 : vector<16x256xf32>
    %cst_32 = arith.constant 0.000000e+00 : f32
    %67 = vector.broadcast %cst_32 : f32 to vector<16x256xf32>
    %68 = arith.maximumf %66, %67 : vector<16x256xf32>
    %69 = arith.truncf %68 : vector<16x256xf32> to vector<16x256xbf16>
    %c0_33 = arith.constant 0 : index
    %c0_34 = arith.constant 0 : index
    %70 = vector.load %arg6[%c0_33, %c0_34] : memref<256x128xbf16, #tpu.memory_space<vmem>>, vector<256x128xbf16>
    %cst_35 = arith.constant dense<0.000000e+00> : vector<16x128xf32>
    %71 = tpu.matmul %69, %70, %cst_35 {dimension_numbers = #tpu.dot_dimension_numbers<[1], [0], [0], [1], [0, 0, 1, 1], [], []>} : vector<16x256xbf16>, vector<256x128xbf16>, vector<16x128xf32> -> vector<16x128xf32>
    %c6 = arith.constant 6 : index
    %c0_36 = arith.constant 0 : index
    %72 = vector.load %arg7[%c6, %c0_36] : memref<8x128xf32, #tpu.memory_space<vmem>>, vector<1x128xf32>
    %73 = vector.broadcast %72 : vector<1x128xf32> to vector<16x128xf32>
    %74 = arith.addf %71, %73 : vector<16x128xf32>
    %75 = arith.addf %74, %60 : vector<16x128xf32>
    %c4 = arith.constant 4 : index
    %c0_37 = arith.constant 0 : index
    %76 = vector.load %arg7[%c4, %c0_37] : memref<8x128xf32, #tpu.memory_space<vmem>>, vector<1x128xf32>
    %c5 = arith.constant 5 : index
    %c0_38 = arith.constant 0 : index
    %77 = vector.load %arg7[%c5, %c0_38] : memref<8x128xf32, #tpu.memory_space<vmem>>, vector<1x128xf32>
    %cst_39 = arith.constant dense<0.000000e+00> : vector<16xf32>
    %78 = vector.multi_reduction <add>, %75, %cst_39 [1] : vector<16x128xf32> to vector<16xf32>
    %79 = vector.shape_cast %78 : vector<16xf32> to vector<16x1xf32>
    %cst_40 = arith.constant 1.280000e+02 : f32
    %80 = vector.broadcast %cst_40 : f32 to vector<16x1xf32>
    %81 = arith.divf %79, %80 : vector<16x1xf32>
    %82 = vector.broadcast %81 : vector<16x1xf32> to vector<16x128xf32>
    %83 = arith.subf %75, %82 : vector<16x128xf32>
    %84 = arith.mulf %83, %83 : vector<16x128xf32>
    %cst_41 = arith.constant dense<0.000000e+00> : vector<16xf32>
    %85 = vector.multi_reduction <add>, %84, %cst_41 [1] : vector<16x128xf32> to vector<16xf32>
    %86 = vector.shape_cast %85 : vector<16xf32> to vector<16x1xf32>
    %cst_42 = arith.constant 1.280000e+02 : f32
    %87 = vector.broadcast %cst_42 : f32 to vector<16x1xf32>
    %88 = arith.divf %86, %87 : vector<16x1xf32>
    %89 = vector.broadcast %81 : vector<16x1xf32> to vector<16x128xf32>
    %90 = arith.subf %75, %89 : vector<16x128xf32>
    %cst_43 = arith.constant 9.99999974E-6 : f32
    %91 = vector.broadcast %cst_43 : f32 to vector<16x1xf32>
    %92 = arith.addf %88, %91 : vector<16x1xf32>
    %93 = math.rsqrt %92 : vector<16x1xf32>
    %94 = vector.broadcast %93 : vector<16x1xf32> to vector<16x128xf32>
    %95 = arith.mulf %90, %94 : vector<16x128xf32>
    %96 = vector.broadcast %76 : vector<1x128xf32> to vector<16x128xf32>
    %97 = arith.mulf %95, %96 : vector<16x128xf32>
    %98 = vector.broadcast %77 : vector<1x128xf32> to vector<16x128xf32>
    %99 = arith.addf %97, %98 : vector<16x128xf32>
    %c0_44 = arith.constant 0 : index
    %c0_45 = arith.constant 0 : index
    %100 = vector.load %arg9[%c0_44, %c0_45] : memref<16x128xf32, #tpu.memory_space<vmem>>, vector<16x128xf32>
    tpu.vector_store %arg9[%c0_44, %c0_45], %99 {strides = array<i32>} : memref<16x128xf32, #tpu.memory_space<vmem>>, vector<16x128xf32>,
    return
  }
  func.func @transform_0(%arg0: i32) -> (i32, i32) {
    %c0_i32 = arith.constant 0 : i32
    %c0_i32_0 = arith.constant 0 : i32
    return %arg0, %c0_i32 : i32, i32
  }
  func.func @transform_1(%arg0: i32) -> (i32, i32) {
    %c0_i32 = arith.constant 0 : i32
    %c0_i32_0 = arith.constant 0 : i32
    return %arg0, %c0_i32 : i32, i32
  }
  func.func @transform_2(%arg0: i32) -> (i32, i32) {
    %c0_i32 = arith.constant 0 : i32
    %c0_i32_0 = arith.constant 0 : i32
    %c0_i32_1 = arith.constant 0 : i32
    return %c0_i32, %c0_i32_0 : i32, i32
  }
  func.func @transform_3(%arg0: i32) -> (i32, i32) {
    %c0_i32 = arith.constant 0 : i32
    %c0_i32_0 = arith.constant 0 : i32
    %c0_i32_1 = arith.constant 0 : i32
    return %c0_i32, %c0_i32_0 : i32, i32
  }
  func.func @transform_4(%arg0: i32) -> (i32, i32) {
    %c0_i32 = arith.constant 0 : i32
    %c0_i32_0 = arith.constant 0 : i32
    %c0_i32_1 = arith.constant 0 : i32
    return %c0_i32, %c0_i32_0 : i32, i32
  }
  func.func @transform_5(%arg0: i32) -> (i32, i32) {
    %c0_i32 = arith.constant 0 : i32
    %c0_i32_0 = arith.constant 0 : i32
    %c0_i32_1 = arith.constant 0 : i32
    return %c0_i32, %c0_i32_0 : i32, i32
  }
  func.func @transform_6(%arg0: i32) -> (i32, i32) {
    %c0_i32 = arith.constant 0 : i32
    %c0_i32_0 = arith.constant 0 : i32
    %c0_i32_1 = arith.constant 0 : i32
    return %c0_i32, %c0_i32_0 : i32, i32
  }
  func.func @transform_7(%arg0: i32) -> (i32, i32) {
    %c0_i32 = arith.constant 0 : i32
    %c0_i32_0 = arith.constant 0 : i32
    %c0_i32_1 = arith.constant 0 : i32
    return %c0_i32, %c0_i32_0 : i32, i32
  }
  func.func @transform_8(%arg0: i32) -> (i32, i32) {
    %c0_i32 = arith.constant 0 : i32
    %c0_i32_0 = arith.constant 0 : i32
    return %arg0, %c0_i32 : i32, i32
  }
}

module attributes {stable_mosaic.version = 11 : i64} {
  func.func @decoder_kernel(%arg0: i32, %arg1: memref<16x128xbf16, #tpu.memory_space<vmem>>, %arg2: memref<16x128xbf16, #tpu.memory_space<vmem>>, %arg3: memref<128x128xbf16, #tpu.memory_space<vmem>>, %arg4: memref<128x128xbf16, #tpu.memory_space<vmem>>, %arg5: memref<128x256xbf16, #tpu.memory_space<vmem>>, %arg6: memref<256x128xbf16, #tpu.memory_space<vmem>>, %arg7: memref<8x128xf32, #tpu.memory_space<vmem>>, %arg8: memref<1x256xf32, #tpu.memory_space<vmem>>, %arg9: memref<16x128xf32, #tpu.memory_space<vmem>>) attributes {dimension_semantics = [#tpu.dimension_semantics<parallel>], iteration_bounds = array<i64: 2>, scalar_prefetch = 0 : i64, scratch_operands = 0 : i64, tpu.core_type = #tpu.core_type<tc>, window_params = [{transform_indices = @transform_0, window_bounds = array<i64: 16, 128>}, {transform_indices = @transform_1, window_bounds = array<i64: 16, 128>}, {pipeline_mode = #tpu.pipeline_mode<synchronous>, transform_indices = @transform_2, window_bounds = array<i64: 128, 128>}, {pipeline_mode = #tpu.pipeline_mode<synchronous>, transform_indices = @transform_3, window_bounds = array<i64: 128, 128>}, {pipeline_mode = #tpu.pipeline_mode<synchronous>, transform_indices = @transform_4, window_bounds = array<i64: 128, 256>}, {pipeline_mode = #tpu.pipeline_mode<synchronous>, transform_indices = @transform_5, window_bounds = array<i64: 256, 128>}, {pipeline_mode = #tpu.pipeline_mode<synchronous>, transform_indices = @transform_6, window_bounds = array<i64: 8, 128>}, {pipeline_mode = #tpu.pipeline_mode<synchronous>, transform_indices = @transform_7, window_bounds = array<i64: 1, 256>}, {transform_indices = @transform_8, window_bounds = array<i64: 16, 128>}]} {
    %c0 = arith.constant 0 : index
    %c0_0 = arith.constant 0 : index
    %0 = vector.load %arg1[%c0, %c0_0] : memref<16x128xbf16, #tpu.memory_space<vmem>>, vector<16x128xbf16>
    %c0_1 = arith.constant 0 : index
    %c0_2 = arith.constant 0 : index
    %1 = vector.load %arg3[%c0_1, %c0_2] : memref<128x128xbf16, #tpu.memory_space<vmem>>, vector<128x128xbf16>
    %cst = arith.constant dense<0.000000e+00> : vector<16x128xf32>
    %2 = tpu.matmul %0, %1, %cst {dimension_numbers = #tpu.dot_dimension_numbers<[1], [0], [0], [1], [0, 0, 1, 1], [], []>} : vector<16x128xbf16>, vector<128x128xbf16>, vector<16x128xf32> -> vector<16x128xf32>
    %c0_3 = arith.constant 0 : index
    %c0_4 = arith.constant 0 : index
    %3 = vector.load %arg7[%c0_3, %c0_4] : memref<8x128xf32, #tpu.memory_space<vmem>>, vector<1x128xf32>
    %4 = vector.broadcast %3 : vector<1x128xf32> to vector<16x128xf32>
    %5 = arith.addf %2, %4 : vector<16x128xf32>
    %c2 = arith.constant 2 : index
    %c0_5 = arith.constant 0 : index
    %6 = vector.load %arg7[%c2, %c0_5] : memref<8x128xf32, #tpu.memory_space<vmem>>, vector<1x128xf32>
    %c3 = arith.constant 3 : index
    %c0_6 = arith.constant 0 : index
    %7 = vector.load %arg7[%c3, %c0_6] : memref<8x128xf32, #tpu.memory_space<vmem>>, vector<1x128xf32>
    %cst_7 = arith.constant dense<0.000000e+00> : vector<16xf32>
    %8 = vector.multi_reduction <add>, %5, %cst_7 [1] : vector<16x128xf32> to vector<16xf32>
    %9 = vector.shape_cast %8 : vector<16xf32> to vector<16x1xf32>
    %cst_8 = arith.constant 1.280000e+02 : f32
    %10 = vector.broadcast %cst_8 : f32 to vector<16x1xf32>
    %11 = arith.divf %9, %10 : vector<16x1xf32>
    %12 = vector.broadcast %11 : vector<16x1xf32> to vector<16x128xf32>
    %13 = arith.subf %5, %12 : vector<16x128xf32>
    %14 = arith.mulf %13, %13 : vector<16x128xf32>
    %cst_9 = arith.constant dense<0.000000e+00> : vector<16xf32>
    %15 = vector.multi_reduction <add>, %14, %cst_9 [1] : vector<16x128xf32> to vector<16xf32>
    %16 = vector.shape_cast %15 : vector<16xf32> to vector<16x1xf32>
    %cst_10 = arith.constant 1.280000e+02 : f32
    %17 = vector.broadcast %cst_10 : f32 to vector<16x1xf32>
    %18 = arith.divf %16, %17 : vector<16x1xf32>
    %19 = vector.broadcast %11 : vector<16x1xf32> to vector<16x128xf32>
    %20 = arith.subf %5, %19 : vector<16x128xf32>
    %cst_11 = arith.constant 9.99999974E-6 : f32
    %21 = vector.broadcast %cst_11 : f32 to vector<16x1xf32>
    %22 = arith.addf %18, %21 : vector<16x1xf32>
    %23 = math.rsqrt %22 : vector<16x1xf32>
    %24 = vector.broadcast %23 : vector<16x1xf32> to vector<16x128xf32>
    %25 = arith.mulf %20, %24 : vector<16x128xf32>
    %26 = vector.broadcast %6 : vector<1x128xf32> to vector<16x128xf32>
    %27 = arith.mulf %25, %26 : vector<16x128xf32>
    %28 = vector.broadcast %7 : vector<1x128xf32> to vector<16x128xf32>
    %29 = arith.addf %27, %28 : vector<16x128xf32>
    %c0_12 = arith.constant 0 : index
    %c0_13 = arith.constant 0 : index
    %30 = vector.load %arg2[%c0_12, %c0_13] : memref<16x128xbf16, #tpu.memory_space<vmem>>, vector<16x128xbf16>
    %c0_14 = arith.constant 0 : index
    %c0_15 = arith.constant 0 : index
    %31 = vector.load %arg4[%c0_14, %c0_15] : memref<128x128xbf16, #tpu.memory_space<vmem>>, vector<128x128xbf16>
    %cst_16 = arith.constant dense<0.000000e+00> : vector<16x128xf32>
    %32 = tpu.matmul %30, %31, %cst_16 {dimension_numbers = #tpu.dot_dimension_numbers<[1], [0], [0], [1], [0, 0, 1, 1], [], []>} : vector<16x128xbf16>, vector<128x128xbf16>, vector<16x128xf32> -> vector<16x128xf32>
    %c1 = arith.constant 1 : index
    %c0_17 = arith.constant 0 : index
    %33 = vector.load %arg7[%c1, %c0_17] : memref<8x128xf32, #tpu.memory_space<vmem>>, vector<1x128xf32>
    %34 = vector.broadcast %33 : vector<1x128xf32> to vector<16x128xf32>
    %35 = arith.addf %32, %34 : vector<16x128xf32>
    %36 = arith.addf %35, %29 : vector<16x128xf32>
    %c2_18 = arith.constant 2 : index
    %c0_19 = arith.constant 0 : index
    %37 = vector.load %arg7[%c2_18, %c0_19] : memref<8x128xf32, #tpu.memory_space<vmem>>, vector<1x128xf32>
    %c3_20 = arith.constant 3 : index
    %c0_21 = arith.constant 0 : index
    %38 = vector.load %arg7[%c3_20, %c0_21] : memref<8x128xf32, #tpu.memory_space<vmem>>, vector<1x128xf32>
    %cst_22 = arith.constant dense<0.000000e+00> : vector<16xf32>
    %39 = vector.multi_reduction <add>, %36, %cst_22 [1] : vector<16x128xf32> to vector<16xf32>
    %40 = vector.shape_cast %39 : vector<16xf32> to vector<16x1xf32>
    %cst_23 = arith.constant 1.280000e+02 : f32
    %41 = vector.broadcast %cst_23 : f32 to vector<16x1xf32>
    %42 = arith.divf %40, %41 : vector<16x1xf32>
    %43 = vector.broadcast %42 : vector<16x1xf32> to vector<16x128xf32>
    %44 = arith.subf %36, %43 : vector<16x128xf32>
    %45 = arith.mulf %44, %44 : vector<16x128xf32>
    %cst_24 = arith.constant dense<0.000000e+00> : vector<16xf32>
    %46 = vector.multi_reduction <add>, %45, %cst_24 [1] : vector<16x128xf32> to vector<16xf32>
    %47 = vector.shape_cast %46 : vector<16xf32> to vector<16x1xf32>
    %cst_25 = arith.constant 1.280000e+02 : f32
    %48 = vector.broadcast %cst_25 : f32 to vector<16x1xf32>
    %49 = arith.divf %47, %48 : vector<16x1xf32>
    %50 = vector.broadcast %42 : vector<16x1xf32> to vector<16x128xf32>
    %51 = arith.subf %36, %50 : vector<16x128xf32>
    %cst_26 = arith.constant 9.99999974E-6 : f32
    %52 = vector.broadcast %cst_26 : f32 to vector<16x1xf32>
    %53 = arith.addf %49, %52 : vector<16x1xf32>
    %54 = math.rsqrt %53 : vector<16x1xf32>
    %55 = vector.broadcast %54 : vector<16x1xf32> to vector<16x128xf32>
    %56 = arith.mulf %51, %55 : vector<16x128xf32>
    %57 = vector.broadcast %37 : vector<1x128xf32> to vector<16x128xf32>
    %58 = arith.mulf %56, %57 : vector<16x128xf32>
    %59 = vector.broadcast %38 : vector<1x128xf32> to vector<16x128xf32>
    %60 = arith.addf %58, %59 : vector<16x128xf32>
    %61 = arith.truncf %60 : vector<16x128xf32> to vector<16x128xbf16>
    %c0_27 = arith.constant 0 : index
    %c0_28 = arith.constant 0 : index
    %62 = vector.load %arg5[%c0_27, %c0_28] : memref<128x256xbf16, #tpu.memory_space<vmem>>, vector<128x256xbf16>
    %cst_29 = arith.constant dense<0.000000e+00> : vector<16x256xf32>
    %63 = tpu.matmul %61, %62, %cst_29 {dimension_numbers = #tpu.dot_dimension_numbers<[1], [0], [0], [1], [0, 0, 1, 1], [], []>} : vector<16x128xbf16>, vector<128x256xbf16>, vector<16x256xf32> -> vector<16x256xf32>
    %c0_30 = arith.constant 0 : index
    %c0_31 = arith.constant 0 : index
    %64 = vector.load %arg8[%c0_30, %c0_31] : memref<1x256xf32, #tpu.memory_space<vmem>>, vector<1x256xf32>
    %65 = vector.broadcast %64 : vector<1x256xf32> to vector<16x256xf32>
    %66 = arith.addf %63, %65 : vector<16x256xf32>
    %cst_32 = arith.constant 0.000000e+00 : f32
    %67 = vector.broadcast %cst_32 : f32 to vector<16x256xf32>
    %68 = arith.maximumf %66, %67 : vector<16x256xf32>
    %69 = arith.truncf %68 : vector<16x256xf32> to vector<16x256xbf16>
    %c0_33 = arith.constant 0 : index
    %c0_34 = arith.constant 0 : index
    %70 = vector.load %arg6[%c0_33, %c0_34] : memref<256x128xbf16, #tpu.memory_space<vmem>>, vector<256x128xbf16>
    %cst_35 = arith.constant dense<0.000000e+00> : vector<16x128xf32>
    %71 = tpu.matmul %69, %70, %cst_35 {dimension_numbers = #tpu.dot_dimension_numbers<[1], [0], [0], [1], [0, 0, 1, 1], [], []>} : vector<16x256xbf16>, vector<256x128xbf16>, vector<16x128xf32> -> vector<16x128xf32>
    %c6 = arith.constant 6 : index
    %c0_36 = arith.constant 0 : index
    %72 = vector.load %arg7[%c6, %c0_36] : memref<8x128xf32, #tpu.memory_space<vmem>>, vector<1x128xf32>
    %73 = vector.broadcast %72 : vector<1x128xf32> to vector<16x128xf32>
    %74 = arith.addf %71, %73 : vector<16x128xf32>
    %75 = arith.addf %74, %60 : vector<16x128xf32>
    %c4 = arith.constant 4 : index
    %c0_37 = arith.constant 0 : index
    %76 = vector.load %arg7[%c4, %c0_37] : memref<8x128xf32, #tpu.memory_space<vmem>>, vector<1x128xf32>
    %c5 = arith.constant 5 : index
    %c0_38 = arith.constant 0 : index
    %77 = vector.load %arg7[%c5, %c0_38] : memref<8x128xf32, #tpu.memory_space<vmem>>, vector<1x128xf32>
    %cst_39 = arith.constant dense<0.000000e+00> : vector<16xf32>
    %78 = vector.multi_reduction <add>, %75, %cst_39 [1] : vector<16x128xf32> to vector<16xf32>
    %79 = vector.shape_cast %78 : vector<16xf32> to vector<16x1xf32>
    %cst_40 = arith.constant 1.280000e+02 : f32
    %80 = vector.broadcast %cst_40 : f32 to vector<16x1xf32>
    %81 = arith.divf %79, %80 : vector<16x1xf32>
    %82 = vector.broadcast %81 : vector<16x1xf32> to vector<16x128xf32>
    %83 = arith.subf %75, %82 : vector<16x128xf32>
    %84 = arith.mulf %83, %83 : vector<16x128xf32>
    %cst_41 = arith.constant dense<0.000000e+00> : vector<16xf32>
    %85 = vector.multi_reduction <add>, %84, %cst_41 [1] : vector<16x128xf32> to vector<16xf32>
    %86 = vector.shape_cast %85 : vector<16xf32> to vector<16x1xf32>
    %cst_42 = arith.constant 1.280000e+02 : f32
    %87 = vector.broadcast %cst_42 : f32 to vector<16x1xf32>
    %88 = arith.divf %86, %87 : vector<16x1xf32>
    %89 = vector.broadcast %81 : vector<16x1xf32> to vector<16x128xf32>
    %90 = arith.subf %75, %89 : vector<16x128xf32>
    %cst_43 = arith.constant 9.99999974E-6 : f32
    %91 = vector.broadcast %cst_43 : f32 to vector<16x1xf32>
    %92 = arith.addf %88, %91 : vector<16x1xf32>
    %93 = math.rsqrt %92 : vector<16x1xf32>
    %94 = vector.broadcast %93 : vector<16x1xf32> to vector<16x128xf32>
    %95 = arith.mulf %90, %94 : vector<16x128xf32>
    %96 = vector.broadcast %76 : vector<1x128xf32> to vector<16x128xf32>
    %97 = arith.mulf %95, %96 : vector<16x128xf32>
    %98 = vector.broadcast %77 : vector<1x128xf32> to vector<16x128xf32>
    %99 = arith.addf %97, %98 : vector<16x128xf32>
    %c0_44 = arith.constant 0 : index
    %c0_45 = arith.constant 0 : index
    %100 = vector.load %arg9[%c0_44, %c0_45] : memref<16x128xf32, #tpu.memory_space<vmem>>, vector<16x128xf32>
    tpu.vector_store %arg9[%c0_44, %c0_45], %99 {strides = array<i32>} : memref<16x128xf32, #tpu.memory_space<vmem>>, vector<16x128xf32>,
    return
  }
  func.func @transform_0(%arg0: i32) -> (i32, i32) {
    %c0_i32 = arith.constant 0 : i32
    %c0_i32_0 = arith.constant 0 : i32
    return %arg0, %c0_i32 : i32, i32
  }
  func.func @transform_1(%arg0: i32) -> (i32, i32) {
    %c0_i32 = arith.constant 0 : i32
    %c0_i32_0 = arith.constant 0 : i32
    return %arg0, %c0_i32 : i32, i32
  }
  func.func @transform_2(%arg0: i32) -> (i32, i32) {
    %c0_i32 = arith.constant 0 : i32
    %c0_i32_0 = arith.constant 0 : i32
    %c0_i32_1 = arith.constant 0 : i32
    return %c0_i32, %c0_i32_0 : i32, i32
  }
  func.func @transform_3(%arg0: i32) -> (i32, i32) {
    %c0_i32 = arith.constant 0 : i32
    %c0_i32_0 = arith.constant 0 : i32
    %c0_i32_1 = arith.constant 0 : i32
    return %c0_i32, %c0_i32_0 : i32, i32
  }
  func.func @transform_4(%arg0: i32) -> (i32, i32) {
    %c0_i32 = arith.constant 0 : i32
    %c0_i32_0 = arith.constant 0 : i32
    %c0_i32_1 = arith.constant 0 : i32
    return %c0_i32, %c0_i32_0 : i32, i32
  }
  func.func @transform_5(%arg0: i32) -> (i32, i32) {
    %c0_i32 = arith.constant 0 : i32
    %c0_i32_0 = arith.constant 0 : i32
    %c0_i32_1 = arith.constant 0 : i32
    return %c0_i32, %c0_i32_0 : i32, i32
  }
  func.func @transform_6(%arg0: i32) -> (i32, i32) {
    %c0_i32 = arith.constant 0 : i32
    %c0_i32_0 = arith.constant 0 : i32
    %c0_i32_1 = arith.constant 0 : i32
    return %c0_i32, %c0_i32_0 : i32, i32
  }
  func.func @transform_7(%arg0: i32) -> (i32, i32) {
    %c0_i32 = arith.constant 0 : i32
    %c0_i32_0 = arith.constant 0 : i32
    %c0_i32_1 = arith.constant 0 : i32
    return %c0_i32, %c0_i32_0 : i32, i32
  }
  func.func @transform_8(%arg0: i32) -> (i32, i32) {
    %c0_i32 = arith.constant 0 : i32
    %c0_i32_0 = arith.constant 0 : i32
    return %arg0, %c0_i32 : i32, i32
  }
}

</mosaic_0001>

<llo_original>
// kernel: tpu_custom_call.1
$region0: #{tpu_custom_call.1}
  #allocation0 [shape = 'u32[]', space=smem, size = 0x4, offset = 0x4, fixed_abs, tag = 'smem constant byte address 0x4 - core index']
  #allocation1 [shape = 'u32[72,128]{1,0:T(1,128)}', space=vmem, size = 0x9000, scoped, tag = 'internal scratch']
  %s0 = inlined_call_operand.hbm [shape: bf16[32,128], index: 0, kind: input, shape index: {}]
  %s1 = inlined_call_operand.hbm [shape: bf16[32,128], index: 1, kind: input, shape index: {}]
  %s2 = inlined_call_operand.hbm [shape: bf16[128,128], index: 2, kind: input, shape index: {}]
  %s3 = inlined_call_operand.hbm [shape: bf16[128,128], index: 3, kind: input, shape index: {}]
  %s4 = inlined_call_operand.hbm [shape: bf16[128,256], index: 4, kind: input, shape index: {}]
  %s5 = inlined_call_operand.hbm [shape: bf16[256,128], index: 5, kind: input, shape index: {}]
  %s6 = inlined_call_operand.hbm [shape: f32[8,128], index: 6, kind: input, shape index: {}]
  %s7 = inlined_call_operand.vmem [shape: f32[1,256], index: 7, kind: input, shape index: {}]
  %s8 = inlined_call_operand.hbm [shape: f32[32,128], index: 8, kind: output, shape index: {}]
  %s9 = sld [smem:[#allocation0]]
  $region93: #{tpu_custom_call.1} parent=0
    _
  %s11 = ssub.s32 1, %s9
  %s12 = scalar_select 0, %s11, %s9
  $region1: #{tpu_custom_call.1} parent=0
    #allocation2 [shape = 'u8[8192]{0}', space=vmem, size = 0x2000, scoped, tag = 'input window, operand 0']
    #allocation3 [shape = 's32[2]{0}', space=sflag, size = 0x8, scoped, tag = 'scoped memory for tpu_custom_call.1']
    #allocation4 [shape = 's32[2]{0}', space=sflag, size = 0x8, scoped, tag = 'scoped memory for tpu_custom_call.1']
    #allocation5 [shape = 'u8[8192]{0}', space=vmem, size = 0x2000, scoped, tag = 'input window, operand 1']
    #allocation6 [shape = 's32[2]{0}', space=sflag, size = 0x8, scoped, tag = 'scoped memory for tpu_custom_call.1']
    #allocation7 [shape = 'u8[32768]{0}', space=vmem, size = 0x8000, scoped, tag = 'input window, operand 2, single buffered']
    #allocation8 [shape = 'u8[32768]{0}', space=vmem, size = 0x8000, scoped, tag = 'input window, operand 3, single buffered']
    #allocation9 [shape = 's32[1]{0}', space=sflag, size = 0x4, scoped, tag = 'scoped memory for tpu_custom_call.1']
    #allocation10 [shape = 'u8[65536]{0}', space=vmem, size = 0x10000, scoped, tag = 'input window, operand 4, single buffered']
    #allocation11 [shape = 'u8[65536]{0}', space=vmem, size = 0x10000, scoped, tag = 'input window, operand 5, single buffered']
    #allocation12 [shape = 's32[1]{0}', space=sflag, size = 0x4, scoped, tag = 'scoped memory for tpu_custom_call.1']
    #allocation13 [shape = 'u8[4096]{0}', space=vmem, size = 0x1000, scoped, tag = 'input window, operand 6, single buffered']
    #allocation14 [shape = 'u8[16384]{0}', space=vmem, size = 0x4000, scoped, tag = 'output window, operand 0']
    %13 = vsyncpa [#allocation3], 0
    %s14 = scalar_lea.sflag [#allocation3], 1
    %15 = vsyncpa %s14, 0
    %16 = vsyncpa [#allocation6], 0
    %s17 = scalar_lea.sflag [#allocation6], 1
    %18 = vsyncpa %s17, 0
    %19 = vsyncpa [#allocation9], 0
    %20 = vsyncpa [#allocation12], 0
    %21 = vsyncpa [#allocation4], 0
    %s22 = scalar_lea.sflag [#allocation4], 1
    %23 = vsyncpa %s22, 0
    loop: start=0, step=1, limit=4
    $region2: #{tpu_custom_call.1} parent=1 // loop_pre_header
      _
    $region3: #{tpu_custom_call.1} parent=1 // loop_header
      %s25 = sphi 0, %s29
      %p26 = scmp.ge.s32.totalorder %s25, 4
      %s35 = sphi 0, %s37
      %s38 = sphi 0, %s35
      %s39 = sphi 0, %s38
      %s55 = sphi 0, %s39
      %s61 = sphi 0, %s63
      %s64 = sphi 0, %s61
      %s65 = sphi 0, %s64
      %s81 = sphi 0, %s65
      %s85 = sphi 0, %s85
      %s87 = sphi 0, %s85
      %s88 = sphi 0, %s87
      %s102 = sphi 0, %s88
      %s106 = sphi 0, %s106
      %s108 = sphi 0, %s106
      %s109 = sphi 0, %s108
      %s123 = sphi 0, %s109
      %s127 = sphi 0, %s127
      %s129 = sphi 0, %s127
      %s130 = sphi 0, %s129
      %s144 = sphi 0, %s130
      %s148 = sphi 0, %s148
      %s150 = sphi 0, %s148
      %s151 = sphi 0, %s150
      %s165 = sphi 0, %s151
      %s169 = sphi 0, %s169
      %s171 = sphi 0, %s169
      %s172 = sphi 0, %s171
      %s186 = sphi 0, %s172
      %s190 = sphi 0, %s190
      %s192 = sphi 0, %s190
      %s193 = sphi 0, %s192
      %s207 = sphi 0, %s193
      %s213 = sphi 0, %s215
      %s216 = sphi 0, %s213
      %s217 = sphi 0, %s216
      %s233 = sphi 0, %s217
    $region4: #{tpu_custom_call.1} parent=1 // loop_header_branch
      %28 = sbr.rel (%p26) target = $region8
    $region5: #{tpu_custom_call.1} parent=1 // loop_body
      %s30 = ssub.s32 %s25, 1
      %s31 = ssub.s32 %s25, 2
      %s32 = sadd.s32 %s25, 1
      %s33 = ssub.s32 %s25, %s32
      %p34 = scmp.eq.s32.totalorder %s33, 0
      %s36 = sadd.s32 %s35, 1
      %s37 = scalar_select %p34, %s35, %s36
      %p40 = pneg %p34
      %p41 = scmp.eq.s32.totalorder %s25, 1
      %p42 = por %p40, %p41
      %p43 = scmp.ne.s32.totalorder %s35, %s38
      %p44 = scmp.eq.s32.totalorder %s25, 0
      %p45 = por %p43, %p44
      %p46 = scmp.ne.s32.totalorder %s35, %s38
      %p47 = scmp.eq.s32.totalorder %s30, 1
      %p48 = por %p46, %p47
      %p49 = scmp.ne.s32.totalorder %s38, %s39
      %p50 = scmp.eq.s32.totalorder %s30, 0
      %p51 = por %p49, %p50
      %p52 = scmp.ne.s32.totalorder %s38, %s39
      %p53 = scmp.eq.s32.totalorder %s31, 1
      %p54 = por %p52, %p53
      %p56 = scmp.ne.s32.totalorder %s39, %s55
      %p57 = scmp.eq.s32.totalorder %s31, 0
      %p58 = por %p56, %p57
      %s59 = ssub.s32 %s25, %s32
      %p60 = scmp.eq.s32.totalorder %s59, 0
      %s62 = sadd.s32 %s61, 1
      %s63 = scalar_select %p60, %s61, %s62
      %p66 = pneg %p60
      %p67 = scmp.eq.s32.totalorder %s25, 1
      %p68 = por %p66, %p67
      %p69 = scmp.ne.s32.totalorder %s61, %s64
      %p70 = scmp.eq.s32.totalorder %s25, 0
      %p71 = por %p69, %p70
      %p72 = scmp.ne.s32.totalorder %s61, %s64
      %p73 = scmp.eq.s32.totalorder %s30, 1
      %p74 = por %p72, %p73
      %p75 = scmp.ne.s32.totalorder %s64, %s65
      %p76 = scmp.eq.s32.totalorder %s30, 0
      %p77 = por %p75, %p76
      %p78 = scmp.ne.s32.totalorder %s64, %s65
      %p79 = scmp.eq.s32.totalorder %s31, 1
      %p80 = por %p78, %p79
      %p82 = scmp.ne.s32.totalorder %s65, %s81
      %p83 = scmp.eq.s32.totalorder %s31, 0
      %p84 = por %p82, %p83
      %s86 = sadd.s32 %s85, 1
      %p89 = scmp.eq.s32.totalorder %s25, 1
      %p90 = scmp.ne.s32.totalorder %s85, %s87
      %p91 = scmp.eq.s32.totalorder %s25, 0
      %p92 = por %p90, %p91
      %p93 = scmp.ne.s32.totalorder %s85, %s87
      %p94 = scmp.eq.s32.totalorder %s30, 1
      %p95 = por %p93, %p94
      %p96 = scmp.ne.s32.totalorder %s87, %s88
      %p97 = scmp.eq.s32.totalorder %s30, 0
      %p98 = por %p96, %p97
      %p99 = scmp.ne.s32.totalorder %s87, %s88
      %p100 = scmp.eq.s32.totalorder %s31, 1
      %p101 = por %p99, %p100
      %p103 = scmp.ne.s32.totalorder %s88, %s102
      %p104 = scmp.eq.s32.totalorder %s31, 0
      %p105 = por %p103, %p104
      %s107 = sadd.s32 %s106, 1
      %p110 = scmp.eq.s32.totalorder %s25, 1
      %p111 = scmp.ne.s32.totalorder %s106, %s108
      %p112 = scmp.eq.s32.totalorder %s25, 0
      %p113 = por %p111, %p112
      %p114 = scmp.ne.s32.totalorder %s106, %s108
      %p115 = scmp.eq.s32.totalorder %s30, 1
      %p116 = por %p114, %p115
      %p117 = scmp.ne.s32.totalorder %s108, %s109
      %p118 = scmp.eq.s32.totalorder %s30, 0
      %p119 = por %p117, %p118
      %p120 = scmp.ne.s32.totalorder %s108, %s109
      %p121 = scmp.eq.s32.totalorder %s31, 1
      %p122 = por %p120, %p121
      %p124 = scmp.ne.s32.totalorder %s109, %s123
      %p125 = scmp.eq.s32.totalorder %s31, 0
      %p126 = por %p124, %p125
      %s128 = sadd.s32 %s127, 1
      %p131 = scmp.eq.s32.totalorder %s25, 1
      %p132 = scmp.ne.s32.totalorder %s127, %s129
      %p133 = scmp.eq.s32.totalorder %s25, 0
      %p134 = por %p132, %p133
      %p135 = scmp.ne.s32.totalorder %s127, %s129
      %p136 = scmp.eq.s32.totalorder %s30, 1
      %p137 = por %p135, %p136
      %p138 = scmp.ne.s32.totalorder %s129, %s130
      %p139 = scmp.eq.s32.totalorder %s30, 0
      %p140 = por %p138, %p139
      %p141 = scmp.ne.s32.totalorder %s129, %s130
      %p142 = scmp.eq.s32.totalorder %s31, 1
      %p143 = por %p141, %p142
      %p145 = scmp.ne.s32.totalorder %s130, %s144
      %p146 = scmp.eq.s32.totalorder %s31, 0
      %p147 = por %p145, %p146
      %s149 = sadd.s32 %s148, 1
      %p152 = scmp.eq.s32.totalorder %s25, 1
      %p153 = scmp.ne.s32.totalorder %s148, %s150
      %p154 = scmp.eq.s32.totalorder %s25, 0
      %p155 = por %p153, %p154
      %p156 = scmp.ne.s32.totalorder %s148, %s150
      %p157 = scmp.eq.s32.totalorder %s30, 1
      %p158 = por %p156, %p157
      %p159 = scmp.ne.s32.totalorder %s150, %s151
      %p160 = scmp.eq.s32.totalorder %s30, 0
      %p161 = por %p159, %p160
      %p162 = scmp.ne.s32.totalorder %s150, %s151
      %p163 = scmp.eq.s32.totalorder %s31, 1
      %p164 = por %p162, %p163
      %p166 = scmp.ne.s32.totalorder %s151, %s165
      %p167 = scmp.eq.s32.totalorder %s31, 0
      %p168 = por %p166, %p167
      %s170 = sadd.s32 %s169, 1
      %p173 = scmp.eq.s32.totalorder %s25, 1
      %p174 = scmp.ne.s32.totalorder %s169, %s171
      %p175 = scmp.eq.s32.totalorder %s25, 0
      %p176 = por %p174, %p175
      %p177 = scmp.ne.s32.totalorder %s169, %s171
      %p178 = scmp.eq.s32.totalorder %s30, 1
      %p179 = por %p177, %p178
      %p180 = scmp.ne.s32.totalorder %s171, %s172
      %p181 = scmp.eq.s32.totalorder %s30, 0
      %p182 = por %p180, %p181
      %p183 = scmp.ne.s32.totalorder %s171, %s172
      %p184 = scmp.eq.s32.totalorder %s31, 1
      %p185 = por %p183, %p184
      %p187 = scmp.ne.s32.totalorder %s172, %s186
      %p188 = scmp.eq.s32.totalorder %s31, 0
      %p189 = por %p187, %p188
      %s191 = sadd.s32 %s190, 1
      %p194 = scmp.eq.s32.totalorder %s25, 1
      %p195 = scmp.ne.s32.totalorder %s190, %s192
      %p196 = scmp.eq.s32.totalorder %s25, 0
      %p197 = por %p195, %p196
      %p198 = scmp.ne.s32.totalorder %s190, %s192
      %p199 = scmp.eq.s32.totalorder %s30, 1
      %p200 = por %p198, %p199
      %p201 = scmp.ne.s32.totalorder %s192, %s193
      %p202 = scmp.eq.s32.totalorder %s30, 0
      %p203 = por %p201, %p202
      %p204 = scmp.ne.s32.totalorder %s192, %s193
      %p205 = scmp.eq.s32.totalorder %s31, 1
      %p206 = por %p204, %p205
      %p208 = scmp.ne.s32.totalorder %s193, %s207
      %p209 = scmp.eq.s32.totalorder %s31, 0
      %p210 = por %p208, %p209
      %s211 = ssub.s32 %s25, %s32
      %p212 = scmp.eq.s32.totalorder %s211, 0
      %s214 = sadd.s32 %s213, 1
      %s215 = scalar_select %p212, %s213, %s214
      %p218 = pneg %p212
      %p219 = scmp.eq.s32.totalorder %s25, 1
      %p220 = por %p218, %p219
      %p221 = scmp.ne.s32.totalorder %s213, %s216
      %p222 = scmp.eq.s32.totalorder %s25, 0
      %p223 = por %p221, %p222
      %p224 = scmp.ne.s32.totalorder %s213, %s216
      %p225 = scmp.eq.s32.totalorder %s30, 1
      %p226 = por %p224, %p225
      %p227 = scmp.ne.s32.totalorder %s216, %s217
      %p228 = scmp.eq.s32.totalorder %s30, 0
      %p229 = por %p227, %p228
      %p230 = scmp.ne.s32.totalorder %s216, %s217
      %p231 = scmp.eq.s32.totalorder %s31, 1
      %p232 = por %p230, %p231
      %p234 = scmp.ne.s32.totalorder %s217, %s233
      %p235 = scmp.eq.s32.totalorder %s31, 0
      %p236 = por %p234, %p235
      %p237 = scmp.le.s32.totalorder 1, %s25
      %p238 = scmp.lt.s32.totalorder %s25, 3
      %p239 = pnand %p237, %p238
      %p240 = pneg %p239
      // Predicated region
      $region9: #{tpu_custom_call.1} parent=5 // pred_check
        _
      $region10: #{tpu_custom_call.1} parent=5 // pred_check_branch
        %242 = sbr.rel (%p239) target = $region12
      $region11: #{tpu_custom_call.1} parent=5 // pred_region
        %s243 = ssub.s32 %s25, 1
        // Predicated region
        $region13: #{tpu_custom_call.1} parent=11 // pred_check
          %p244 = pneg %p98
        $region14: #{tpu_custom_call.1} parent=11 // pred_check_branch
          %246 = sbr.rel (%p244) target = $region16
        $region15: #{tpu_custom_call.1} parent=11 // pred_region
          %248 = vsyncadd [#allocation6], 0
          %s249 = sshll.u32 %s2, 4
          %s250 = int_to_ptr.hbm [resolvable:$true] %s249
          %s251 = sshll.u32 [#allocation7], 4
          %s252 = int_to_ptr.vmem [resolvable:$true] %s251
          %257 = dma.hbm_to_vmem [thread:$0]  %s250, 1024, %s252, [#allocation6], 64, 64, 4
        $region16: #{tpu_custom_call.1} parent=11 // pred_fallthru
          _
        // Predicated region
        $region17: #{tpu_custom_call.1} parent=11 // pred_check
          %p258 = pneg %p119
        $region18: #{tpu_custom_call.1} parent=11 // pred_check_branch
          %260 = sbr.rel (%p258) target = $region20
        $region19: #{tpu_custom_call.1} parent=11 // pred_region
          %262 = vsyncadd [#allocation9], 0
          %s263 = sshll.u32 %s3, 4
          %s264 = int_to_ptr.hbm [resolvable:$true] %s263
          %s265 = sshll.u32 [#allocation8], 4
          %s266 = int_to_ptr.vmem [resolvable:$true] %s265
          %271 = dma.hbm_to_vmem [thread:$0]  %s264, 1024, %s266, [#allocation9], 64, 64, 4
        $region20: #{tpu_custom_call.1} parent=11 // pred_fallthru
          _
        // Predicated region
        $region21: #{tpu_custom_call.1} parent=11 // pred_check
          %p272 = pneg %p140
        $region22: #{tpu_custom_call.1} parent=11 // pred_check_branch
          %274 = sbr.rel (%p272) target = $region24
        $region23: #{tpu_custom_call.1} parent=11 // pred_region
          %276 = vsyncadd [#allocation9], 0
          %s277 = sshll.u32 %s4, 4
          %s278 = int_to_ptr.hbm [resolvable:$true] %s277
          %s279 = sshll.u32 [#allocation10], 4
          %s280 = int_to_ptr.vmem [resolvable:$true] %s279
          %285 = dma.hbm_to_vmem [thread:$0]  %s278, 2048, %s280, [#allocation9], 128, 128, 8
        $region24: #{tpu_custom_call.1} parent=11 // pred_fallthru
          _
        // Predicated region
        $region25: #{tpu_custom_call.1} parent=11 // pred_check
          %p286 = pneg %p161
        $region26: #{tpu_custom_call.1} parent=11 // pred_check_branch
          %288 = sbr.rel (%p286) target = $region28
        $region27: #{tpu_custom_call.1} parent=11 // pred_region
          %290 = vsyncadd [#allocation12], 0
          %s291 = sshll.u32 %s5, 4
          %s292 = int_to_ptr.hbm [resolvable:$true] %s291
          %s293 = sshll.u32 [#allocation11], 4
          %s294 = int_to_ptr.vmem [resolvable:$true] %s293
          %299 = dma.hbm_to_vmem [thread:$0]  %s292, 2048, %s294, [#allocation12], 64, 64, 4
        $region28: #{tpu_custom_call.1} parent=11 // pred_fallthru
          _
        // Predicated region
        $region29: #{tpu_custom_call.1} parent=11 // pred_check
          %p300 = pneg %p182
        $region30: #{tpu_custom_call.1} parent=11 // pred_check_branch
          %302 = sbr.rel (%p300) target = $region32
        $region31: #{tpu_custom_call.1} parent=11 // pred_region
          %304 = vsyncadd [#allocation12], 0
          %s306 = sshll.u32 %s6, 4
          %s307 = int_to_ptr.hbm [resolvable:$true] %s306
          %s308 = sshll.u32 [#allocation13], 4
          %s309 = int_to_ptr.vmem [resolvable:$true] %s308
          %311 = dma.hbm_to_vmem [thread:$0]  %s307, 128, %s309, [#allocation12]
        $region32: #{tpu_custom_call.1} parent=11 // pred_fallthru
          _
        // Predicated region
        $region33: #{tpu_custom_call.1} parent=11 // pred_check
          %p312 = pneg %p203
        $region34: #{tpu_custom_call.1} parent=11 // pred_check_branch
          %314 = sbr.rel (%p312) target = $region36
        $region35: #{tpu_custom_call.1} parent=11 // pred_region
          _
        $region36: #{tpu_custom_call.1} parent=11 // pred_fallthru
          _
      $region12: #{tpu_custom_call.1} parent=5 // pred_fallthru
        _
      %p315 = scmp.lt.s32.totalorder %s25, 2
      // Predicated region
      $region37: #{tpu_custom_call.1} parent=5 // pred_check
        %p316 = pneg %p315
      $region38: #{tpu_custom_call.1} parent=5 // pred_check_branch
        %318 = sbr.rel (%p316) target = $region40
      $region39: #{tpu_custom_call.1} parent=5 // pred_region
        // Predicated region
        $region41: #{tpu_custom_call.1} parent=39 // pred_check
          %p319 = pneg %p45
        $region42: #{tpu_custom_call.1} parent=39 // pred_check_branch
          %321 = sbr.rel (%p319) target = $region44
        $region43: #{tpu_custom_call.1} parent=39 // pred_region
          %s322 = sand.u32 %s35, 1
          %s323 = scalar_lea.sflag [#allocation3], %s322
          %s324 = sand.u32 %s35, 1
          %s325 = smul.addr %s324, 8
          %s326 = scalar_lea.vmem [#allocation2], %s325
          %s327 = smul.u32 2, %s25
          %329 = vsyncadd %s323, 0
          %s330 = smul.addr %s327, 4
          %s331 = scalar_lea.hbm %s0, %s330
          %s332 = sshll.u32 %s331, 4
          %s333 = int_to_ptr.hbm [resolvable:$true] %s332
          %s334 = sshll.u32 %s326, 4
          %s335 = int_to_ptr.vmem [resolvable:$true] %s334
          %340 = dma.hbm_to_vmem [thread:$0]  %s333, 128, %s335, %s323, 64, 64, 4
        $region44: #{tpu_custom_call.1} parent=39 // pred_fallthru
          _
        // Predicated region
        $region45: #{tpu_custom_call.1} parent=39 // pred_check
          %p341 = pneg %p71
        $region46: #{tpu_custom_call.1} parent=39 // pred_check_branch
          %343 = sbr.rel (%p341) target = $region48
        $region47: #{tpu_custom_call.1} parent=39 // pred_region
          %s344 = sand.u32 %s25, 1
          %s345 = scalar_lea.sflag [#allocation6], %s344
          %s346 = sand.u32 %s61, 1
          %s347 = smul.addr %s346, 8
          %s348 = scalar_lea.vmem [#allocation5], %s347
          %s349 = smul.u32 2, %s25
          %351 = vsyncadd %s345, 0
          %s352 = smul.addr %s349, 4
          %s353 = scalar_lea.hbm %s1, %s352
          %s354 = sshll.u32 %s353, 4
          %s355 = int_to_ptr.hbm [resolvable:$true] %s354
          %s356 = sshll.u32 %s348, 4
          %s357 = int_to_ptr.vmem [resolvable:$true] %s356
          %362 = dma.hbm_to_vmem [thread:$0]  %s355, 128, %s357, %s345, 64, 64, 4
        $region48: #{tpu_custom_call.1} parent=39 // pred_fallthru
          _
      $region40: #{tpu_custom_call.1} parent=5 // pred_fallthru
        _
      %p363 = scmp.le.s32.totalorder 1, %s25
      %p364 = scmp.lt.s32.totalorder %s25, 3
      %p365 = pnand %p363, %p364
      %p366 = pneg %p365
      // Predicated region
      $region49: #{tpu_custom_call.1} parent=5 // pred_check
        _
      $region50: #{tpu_custom_call.1} parent=5 // pred_check_branch
        %368 = sbr.rel (%p365) target = $region52
      $region51: #{tpu_custom_call.1} parent=5 // pred_region
        %s369 = ssub.s32 %s25, 1
        %s370 = sand.u32 %s38, 1
        %s371 = scalar_lea.sflag [#allocation3], %s370
        %s372 = sand.u32 %s38, 1
        %s373 = smul.addr %s372, 8
        %s374 = scalar_lea.vmem [#allocation2], %s373
        // Predicated region
        $region53: #{tpu_custom_call.1} parent=51 // pred_check
          %p375 = pneg %p51
        $region54: #{tpu_custom_call.1} parent=51 // pred_check_branch
          %377 = sbr.rel (%p375) target = $region56
        $region55: #{tpu_custom_call.1} parent=51 // pred_region
          %379 = dma.done %s371, 128
        $region56: #{tpu_custom_call.1} parent=51 // pred_fallthru
          _
        %s380 = sand.u32 %s30, 1
        %s381 = scalar_lea.sflag [#allocation6], %s380
        %s382 = sand.u32 %s64, 1
        %s383 = smul.addr %s382, 8
        %s384 = scalar_lea.vmem [#allocation5], %s383
        // Predicated region
        $region57: #{tpu_custom_call.1} parent=51 // pred_check
          %p385 = pneg %p77
        $region58: #{tpu_custom_call.1} parent=51 // pred_check_branch
          %387 = sbr.rel (%p385) target = $region60
        $region59: #{tpu_custom_call.1} parent=51 // pred_region
          %389 = dma.done %s381, 128
        $region60: #{tpu_custom_call.1} parent=51 // pred_fallthru
          _
        // Predicated region
        $region61: #{tpu_custom_call.1} parent=51 // pred_check
          %p390 = pneg %p98
        $region62: #{tpu_custom_call.1} parent=51 // pred_check_branch
          %392 = sbr.rel (%p390) target = $region64
        $region63: #{tpu_custom_call.1} parent=51 // pred_region
          %394 = dma.done [#allocation6], 1024
        $region64: #{tpu_custom_call.1} parent=51 // pred_fallthru
          _
        // Predicated region
        $region65: #{tpu_custom_call.1} parent=51 // pred_check
          %p395 = pneg %p119
        $region66: #{tpu_custom_call.1} parent=51 // pred_check_branch
          %397 = sbr.rel (%p395) target = $region68
        $region67: #{tpu_custom_call.1} parent=51 // pred_region
          %399 = dma.done [#allocation9], 1024
        $region68: #{tpu_custom_call.1} parent=51 // pred_fallthru
          _
        // Predicated region
        $region69: #{tpu_custom_call.1} parent=51 // pred_check
          %p400 = pneg %p140
        $region70: #{tpu_custom_call.1} parent=51 // pred_check_branch
          %402 = sbr.rel (%p400) target = $region72
        $region71: #{tpu_custom_call.1} parent=51 // pred_region
          %404 = dma.done [#allocation9], 2048
        $region72: #{tpu_custom_call.1} parent=51 // pred_fallthru
          _
        // Predicated region
        $region73: #{tpu_custom_call.1} parent=51 // pred_check
          %p405 = pneg %p161
        $region74: #{tpu_custom_call.1} parent=51 // pred_check_branch
          %407 = sbr.rel (%p405) target = $region76
        $region75: #{tpu_custom_call.1} parent=51 // pred_region
          %409 = dma.done [#allocation12], 2048
        $region76: #{tpu_custom_call.1} parent=51 // pred_fallthru
          _
        // Predicated region
        $region77: #{tpu_custom_call.1} parent=51 // pred_check
          %p410 = pneg %p182
        $region78: #{tpu_custom_call.1} parent=51 // pred_check_branch
          %412 = sbr.rel (%p410) target = $region80
        $region79: #{tpu_custom_call.1} parent=51 // pred_region
          %414 = dma.done [#allocation12], 128
        $region80: #{tpu_custom_call.1} parent=51 // pred_fallthru
          _
        %s415 = sand.u32 %s38, 1
        %s416 = scalar_lea.sflag [#allocation3], %s415
        %s417 = sand.u32 %s38, 1
        %s418 = smul.addr %s417, 8
        %s419 = scalar_lea.vmem [#allocation2], %s418
        %p420 = pneg %p51
        %p421 = pneg %p48
        %s422 = sand.u32 %s30, 1
        %s423 = scalar_lea.sflag [#allocation6], %s422
        %s424 = sand.u32 %s64, 1
        %s425 = smul.addr %s424, 8
        %s426 = scalar_lea.vmem [#allocation5], %s425
        %p427 = pneg %p77
        %p428 = pneg %p74
        %p429 = pneg %p98
        %p430 = pneg %p95
        %p431 = pneg %p119
        %p432 = pneg %p116
        %p433 = pneg %p140
        %p434 = pneg %p137
        %p435 = pneg %p161
        %p436 = pneg %p158
        %p437 = pneg %p182
        %p438 = pneg %p179
        %p439 = pneg %p203
        %p440 = pneg %p200
        %p441 = pneg %p229
        %p442 = pneg %p226
        %s443 = sand.u32 %s216, 1
        %s444 = scalar_lea.sflag [#allocation4], %s443
        %s445 = sand.u32 %s216, 1
        %s446 = smul.addr %s445, 16
        %s447 = scalar_lea.vmem [#allocation14], %s446
        %s448 = smul.u32 2, %s30
        %s449 = smul.u32 2, %s30
        %s450 = smul.u32 2, %s30
        %v451 = vld [vmem:[%s374] sm:$0xf]
        %v452 = vld [vmem:[%s374 + $0x4] sm:$0xf]
        %v453 = vld [vmem:[#allocation7] sm:$0xf]
        %v454 = vld [vmem:[#allocation7 + $0x4] sm:$0xf]
        %v455 = vld [vmem:[#allocation7 + $0x8] sm:$0xf]
        %v456 = vld [vmem:[#allocation7 + $0xc] sm:$0xf]
        %v457 = vld [vmem:[#allocation7 + $0x10] sm:$0xf]
        %v458 = vld [vmem:[#allocation7 + $0x14] sm:$0xf]
        %v459 = vld [vmem:[#allocation7 + $0x18] sm:$0xf]
        %v460 = vld [vmem:[#allocation7 + $0x1c] sm:$0xf]
        %v461 = vld [vmem:[#allocation7 + $0x20] sm:$0xf]
        %v462 = vld [vmem:[#allocation7 + $0x24] sm:$0xf]
        %v463 = vld [vmem:[#allocation7 + $0x28] sm:$0xf]
        %v464 = vld [vmem:[#allocation7 + $0x2c] sm:$0xf]
        %v465 = vld [vmem:[#allocation7 + $0x30] sm:$0xf]
        %v466 = vld [vmem:[#allocation7 + $0x34] sm:$0xf]
        %v467 = vld [vmem:[#allocation7 + $0x38] sm:$0xf]
        %v468 = vld [vmem:[#allocation7 + $0x3c] sm:$0xf]
        %v469 = vld [vmem:[#allocation13] sm:$0x1]
        %v470 = vperm.slane %v469, 0
        %v473 = vunpack.c.l.b16 %v451
        %v474 = vunpack.c.l.b16 %v452
        %v475 = vpack.c.b16 %v474, %v473
        %v493 = vunpack.c.l.b16 %v453
        %v494 = vunpack.c.l.b16 %v454
        %v495 = vunpack.c.l.b16 %v455
        %v496 = vunpack.c.l.b16 %v456
        %v497 = vunpack.c.l.b16 %v457
        %v498 = vunpack.c.l.b16 %v458
        %v499 = vunpack.c.l.b16 %v459
        %v500 = vunpack.c.l.b16 %v460
        %v501 = vunpack.c.l.b16 %v461
        %v502 = vunpack.c.l.b16 %v462
        %v503 = vunpack.c.l.b16 %v463
        %v504 = vunpack.c.l.b16 %v464
        %v505 = vunpack.c.l.b16 %v465
        %v506 = vunpack.c.l.b16 %v466
        %v507 = vunpack.c.l.b16 %v467
        %v508 = vunpack.c.l.b16 %v468
        %v509 = vpack.c.b16 %v494, %v493
        %v510 = vpack.c.b16 %v496, %v495
        %v511 = vpack.c.b16 %v498, %v497
        %v512 = vpack.c.b16 %v500, %v499
        %v513 = vpack.c.b16 %v502, %v501
        %v514 = vpack.c.b16 %v504, %v503
        %v515 = vpack.c.b16 %v506, %v505
        %v516 = vpack.c.b16 %v508, %v507
        %525 = vmatpush.bf16.msra.mxu0 %v516
        %526 = vmatpush.bf16.msra.mxu0 %v515
        %527 = vmatpush.bf16.msra.mxu0 %v514
        %528 = vmatpush.bf16.msra.mxu0 %v513
        %529 = vmatpush.bf16.msra.mxu0 %v512
        %530 = vmatpush.bf16.msra.mxu0 %v511
        %531 = vmatpush.bf16.msra.mxu0 %v510
        %532 = vmatpush.bf16.msra.mxu0 %v509
        %533 = vmatmul.bf16.gmra.mxu0 %v475
        %v534 = vpop.f32.mrf.mxu0
        %v535 = vadd.f32 %v470, %v534
        %v536 = vpop.f32.mrf.mxu0
        %v537 = vadd.f32 %v470, %v536
        %538 = vdwg.mxu0
        %v539 = vld [vmem:[#allocation13 + $0x2] sm:$0x1]
        %v540 = vld [vmem:[#allocation13 + $0x3] sm:$0x1]
        %541 = vadd.xlane.f32.xlu0 %v535
        %v542 = vpop.xlane.xlu0 %541
        %543 = vadd.xlane.f32.xlu0 %v537
        %v544 = vpop.xlane.xlu0 %543
        %v545 = vrcp.pop 128.0
        %v546 = vmul.f32 128.0, %v545
        %v547 = vsub.f32 1.0, %v546
        %v548 = vmul.f32 %v545, %v547
        %v549 = vadd.f32 %v545, %v548
        %vm550 = vweird.f32 %v545
        %v551 = vsel %vm550, %v545, %v549
        %v552 = vmul.f32 %v542, %v551
        %v553 = vmul.f32 %v544, %v551
        %v554 = vsub.f32 %v535, %v552
        %v555 = vsub.f32 %v537, %v553
        %v556 = vmul.f32 %v554, %v554
        %v557 = vmul.f32 %v555, %v555
        %558 = vadd.xlane.f32.xlu0 %v556
        %v559 = vpop.xlane.xlu0 %558
        %560 = vadd.xlane.f32.xlu0 %v557
        %v561 = vpop.xlane.xlu0 %560
        %v562 = vmul.f32 %v559, %v551
        %v563 = vmul.f32 %v561, %v551
        %v564 = vadd.f32 %v562, 1e-05
        %v565 = vadd.f32 %v563, 1e-05
        %v566 = vrsqrt.pop %v564
        %v567 = vmul.f32 %v566, %v564
        %v568 = vmul.f32 %v567, %v566
        %v569 = vmul.f32 0.5, %v568
        %v570 = vsub.f32 1.5, %v569
        %v571 = vmul.f32 %v566, %v570
        %vm572 = vweird.f32 %v564
        %vm573 = vweird.f32 %v566
        %vm574 = vmor %vm572, %vm573
        %v575 = vsel %vm574, %v566, %v571
        %v576 = vrsqrt.pop %v565
        %v577 = vmul.f32 %v576, %v565
        %v578 = vmul.f32 %v577, %v576
        %v579 = vmul.f32 0.5, %v578
        %v580 = vsub.f32 1.5, %v579
        %v581 = vmul.f32 %v576, %v580
        %vm582 = vweird.f32 %v565
        %vm583 = vweird.f32 %v576
        %vm584 = vmor %vm582, %vm583
        %v585 = vsel %vm584, %v576, %v581
        %v586 = vmul.f32 %v554, %v575
        %v587 = vmul.f32 %v555, %v585
        %v588 = vperm.slane %v539, 0
        %v589 = vmul.f32 %v586, %v588
        %v590 = vmul.f32 %v587, %v588
        %v591 = vperm.slane %v540, 0
        %v592 = vadd.f32 %v589, %v591
        %v593 = vadd.f32 %v590, %v591
        %v594 = vld [vmem:[%s384] sm:$0xf]
        %v595 = vld [vmem:[%s384 + $0x4] sm:$0xf]
        %v596 = vld [vmem:[#allocation8] sm:$0xf]
        %v597 = vld [vmem:[#allocation8 + $0x4] sm:$0xf]
        %v598 = vld [vmem:[#allocation8 + $0x8] sm:$0xf]
        %v599 = vld [vmem:[#allocation8 + $0xc] sm:$0xf]
        %v600 = vld [vmem:[#allocation8 + $0x10] sm:$0xf]
        %v601 = vld [vmem:[#allocation8 + $0x14] sm:$0xf]
        %v602 = vld [vmem:[#allocation8 + $0x18] sm:$0xf]
        %v603 = vld [vmem:[#allocation8 + $0x1c] sm:$0xf]
        %v604 = vld [vmem:[#allocation8 + $0x20] sm:$0xf]
        %v605 = vld [vmem:[#allocation8 + $0x24] sm:$0xf]
        %v606 = vld [vmem:[#allocation8 + $0x28] sm:$0xf]
        %v607 = vld [vmem:[#allocation8 + $0x2c] sm:$0xf]
        %v608 = vld [vmem:[#allocation8 + $0x30] sm:$0xf]
        %v609 = vld [vmem:[#allocation8 + $0x34] sm:$0xf]
        %v610 = vld [vmem:[#allocation8 + $0x38] sm:$0xf]
        %v611 = vld [vmem:[#allocation8 + $0x3c] sm:$0xf]
        %v612 = vld [vmem:[#allocation13 + $0x1] sm:$0x1]
        %v613 = vperm.slane %v612, 0
        %v616 = vunpack.c.l.b16 %v594
        %v617 = vunpack.c.l.b16 %v595
        %v618 = vpack.c.b16 %v617, %v616
        %v636 = vunpack.c.l.b16 %v596
        %v637 = vunpack.c.l.b16 %v597
        %v638 = vunpack.c.l.b16 %v598
        %v639 = vunpack.c.l.b16 %v599
        %v640 = vunpack.c.l.b16 %v600
        %v641 = vunpack.c.l.b16 %v601
        %v642 = vunpack.c.l.b16 %v602
        %v643 = vunpack.c.l.b16 %v603
        %v644 = vunpack.c.l.b16 %v604
        %v645 = vunpack.c.l.b16 %v605
        %v646 = vunpack.c.l.b16 %v606
        %v647 = vunpack.c.l.b16 %v607
        %v648 = vunpack.c.l.b16 %v608
        %v649 = vunpack.c.l.b16 %v609
        %v650 = vunpack.c.l.b16 %v610
        %v651 = vunpack.c.l.b16 %v611
        %v652 = vpack.c.b16 %v637, %v636
        %v653 = vpack.c.b16 %v639, %v638
        %v654 = vpack.c.b16 %v641, %v640
        %v655 = vpack.c.b16 %v643, %v642
        %v656 = vpack.c.b16 %v645, %v644
        %v657 = vpack.c.b16 %v647, %v646
        %v658 = vpack.c.b16 %v649, %v648
        %v659 = vpack.c.b16 %v651, %v650
        %668 = vmatpush.bf16.msra.mxu0 %v659
        %669 = vmatpush.bf16.msra.mxu0 %v658
        %670 = vmatpush.bf16.msra.mxu0 %v657
        %671 = vmatpush.bf16.msra.mxu0 %v656
        %672 = vmatpush.bf16.msra.mxu0 %v655
        %673 = vmatpush.bf16.msra.mxu0 %v654
        %674 = vmatpush.bf16.msra.mxu0 %v653
        %675 = vmatpush.bf16.msra.mxu0 %v652
        %676 = vmatmul.bf16.gmra.mxu0 %v618
        %v677 = vpop.f32.mrf.mxu0
        %v678 = vadd.f32 %v613, %v677
        %v679 = vpop.f32.mrf.mxu0
        %v680 = vadd.f32 %v613, %v679
        %681 = vdwg.mxu0
        %v682 = vadd.f32 %v678, %v592
        %v683 = vadd.f32 %v680, %v593
        %684 = vadd.xlane.f32.xlu0 %v682
        %v685 = vpop.xlane.xlu0 %684
        %686 = vadd.xlane.f32.xlu0 %v683
        %v687 = vpop.xlane.xlu0 %686
        %v688 = vmul.f32 %v685, %v551
        %v689 = vmul.f32 %v687, %v551
        %v690 = vsub.f32 %v682, %v688
        %v691 = vsub.f32 %v683, %v689
        %v692 = vmul.f32 %v690, %v690
        %v693 = vmul.f32 %v691, %v691
        %694 = vadd.xlane.f32.xlu0 %v692
        %v695 = vpop.xlane.xlu0 %694
        %696 = vadd.xlane.f32.xlu0 %v693
        %v697 = vpop.xlane.xlu0 %696
        %v698 = vmul.f32 %v695, %v551
        %v699 = vmul.f32 %v697, %v551
        %v700 = vadd.f32 %v698, 1e-05
        %v701 = vadd.f32 %v699, 1e-05
        %v702 = vrsqrt.pop %v700
        %v703 = vmul.f32 %v702, %v700
        %v704 = vmul.f32 %v703, %v702
        %v705 = vmul.f32 0.5, %v704
        %v706 = vsub.f32 1.5, %v705
        %v707 = vmul.f32 %v702, %v706
        %vm708 = vweird.f32 %v700
        %vm709 = vweird.f32 %v702
        %vm710 = vmor %vm708, %vm709
        %v711 = vsel %vm710, %v702, %v707
        %v712 = vrsqrt.pop %v701
        %v713 = vmul.f32 %v712, %v701
        %v714 = vmul.f32 %v713, %v712
        %v715 = vmul.f32 0.5, %v714
        %v716 = vsub.f32 1.5, %v715
        %v717 = vmul.f32 %v712, %v716
        %vm718 = vweird.f32 %v701
        %vm719 = vweird.f32 %v712
        %vm720 = vmor %vm718, %vm719
        %v721 = vsel %vm720, %v712, %v717
        %v722 = vmul.f32 %v690, %v711
        %v723 = vmul.f32 %v691, %v721
        %v724 = vmul.f32 %v722, %v588
        %v725 = vmul.f32 %v723, %v588
        %v726 = vadd.f32 %v724, %v591
        %v727 = vadd.f32 %v725, %v591
        %v728 = vpack.c.bf16 %v727, %v726
        %v729 = vld [vmem:[#allocation10] sm:$0xff]
        %v730 = vld [vmem:[#allocation10 + $0x8] sm:$0xff]
        %v731 = vld [vmem:[#allocation10 + $0x10] sm:$0xff]
        %v732 = vld [vmem:[#allocation10 + $0x18] sm:$0xff]
        %v733 = vld [vmem:[#allocation10 + $0x20] sm:$0xff]
        %v734 = vld [vmem:[#allocation10 + $0x28] sm:$0xff]
        %v735 = vld [vmem:[#allocation10 + $0x30] sm:$0xff]
        %v736 = vld [vmem:[#allocation10 + $0x38] sm:$0xff]
        %v737 = vld [vmem:[#allocation10 + $0x40] sm:$0xff]
        %v738 = vld [vmem:[#allocation10 + $0x48] sm:$0xff]
        %v739 = vld [vmem:[#allocation10 + $0x50] sm:$0xff]
        %v740 = vld [vmem:[#allocation10 + $0x58] sm:$0xff]
        %v741 = vld [vmem:[#allocation10 + $0x60] sm:$0xff]
        %v742 = vld [vmem:[#allocation10 + $0x68] sm:$0xff]
        %v743 = vld [vmem:[#allocation10 + $0x70] sm:$0xff]
        %v744 = vld [vmem:[#allocation10 + $0x78] sm:$0xff]
        %v745 = vld [vmem:[%s7] sm:$0x3]
        %v747 = vperm.slane %v745, 0
        %v748 = vperm.slane %v745, 1
        %v767 = vunpack.c.l.b16 %v729
        %v768 = vunpack.c.h.b16 %v729
        %v769 = vunpack.c.l.b16 %v730
        %v770 = vunpack.c.h.b16 %v730
        %v771 = vunpack.c.l.b16 %v731
        %v772 = vunpack.c.h.b16 %v731
        %v773 = vunpack.c.l.b16 %v732
        %v774 = vunpack.c.h.b16 %v732
        %v775 = vunpack.c.l.b16 %v733
        %v776 = vunpack.c.h.b16 %v733
        %v777 = vunpack.c.l.b16 %v734
        %v778 = vunpack.c.h.b16 %v734
        %v779 = vunpack.c.l.b16 %v735
        %v780 = vunpack.c.h.b16 %v735
        %v781 = vunpack.c.l.b16 %v736
        %v782 = vunpack.c.h.b16 %v736
        %v783 = vunpack.c.l.b16 %v737
        %v784 = vunpack.c.h.b16 %v737
        %v785 = vunpack.c.l.b16 %v738
        %v786 = vunpack.c.h.b16 %v738
        %v787 = vunpack.c.l.b16 %v739
        %v788 = vunpack.c.h.b16 %v739
        %v789 = vunpack.c.l.b16 %v740
        %v790 = vunpack.c.h.b16 %v740
        %v791 = vunpack.c.l.b16 %v741
        %v792 = vunpack.c.h.b16 %v741
        %v793 = vunpack.c.l.b16 %v742
        %v794 = vunpack.c.h.b16 %v742
        %v795 = vunpack.c.l.b16 %v743
        %v796 = vunpack.c.h.b16 %v743
        %v797 = vunpack.c.l.b16 %v744
        %v798 = vunpack.c.h.b16 %v744
        %v799 = vpack.c.b16 %v769, %v767
        %v800 = vpack.c.b16 %v770, %v768
        %v801 = vpack.c.b16 %v773, %v771
        %v802 = vpack.c.b16 %v774, %v772
        %v803 = vpack.c.b16 %v777, %v775
        %v804 = vpack.c.b16 %v778, %v776
        %v805 = vpack.c.b16 %v781, %v779
        %v806 = vpack.c.b16 %v782, %v780
        %v807 = vpack.c.b16 %v785, %v783
        %v808 = vpack.c.b16 %v786, %v784
        %v809 = vpack.c.b16 %v789, %v787
        %v810 = vpack.c.b16 %v790, %v788
        %v811 = vpack.c.b16 %v793, %v791
        %v812 = vpack.c.b16 %v794, %v792
        %v813 = vpack.c.b16 %v797, %v795
        %v814 = vpack.c.b16 %v798, %v796
        %831 = vmatpush.bf16.msra.mxu0 %v813
        %832 = vmatpush.bf16.msra.mxu0 %v811
        %833 = vmatpush.bf16.msra.mxu0 %v809
        %834 = vmatpush.bf16.msra.mxu0 %v807
        %835 = vmatpush.bf16.msra.mxu0 %v805
        %836 = vmatpush.bf16.msra.mxu0 %v803
        %837 = vmatpush.bf16.msra.mxu0 %v801
        %838 = vmatpush.bf16.msra.mxu0 %v799
        %839 = vmatmul.bf16.gmra.mxu0 %v728
        %v840 = vpop.f32.mrf.mxu0
        %v841 = vadd.f32 %v747, %v840
        %v842 = vpop.f32.mrf.mxu0
        %v843 = vadd.f32 %v747, %v842
        %844 = vdwg.mxu0
        %845 = vmatpush.bf16.msra.mxu0 %v814
        %846 = vmatpush.bf16.msra.mxu0 %v812
        %847 = vmatpush.bf16.msra.mxu0 %v810
        %848 = vmatpush.bf16.msra.mxu0 %v808
        %849 = vmatpush.bf16.msra.mxu0 %v806
        %850 = vmatpush.bf16.msra.mxu0 %v804
        %851 = vmatpush.bf16.msra.mxu0 %v802
        %852 = vmatpush.bf16.msra.mxu0 %v800
        %853 = vmatmul.bf16.gmra.mxu0 %v728
        %v854 = vpop.f32.mrf.mxu0
        %v855 = vadd.f32 %v748, %v854
        %v856 = vpop.f32.mrf.mxu0
        %v857 = vadd.f32 %v748, %v856
        %858 = vdwg.mxu0
        %v859 = vmax.f32 %v841, 0.0
        %v860 = vmax.f32 %v855, 0.0
        %v861 = vmax.f32 %v843, 0.0
        %v862 = vmax.f32 %v857, 0.0
        %v863 = vpack.c.bf16 %v861, %v859
        %v864 = vpack.c.bf16 %v862, %v860
        %v865 = vld [vmem:[#allocation11] sm:$0xf]
        %v866 = vld [vmem:[#allocation11 + $0x4] sm:$0xf]
        %v867 = vld [vmem:[#allocation11 + $0x8] sm:$0xf]
        %v868 = vld [vmem:[#allocation11 + $0xc] sm:$0xf]
        %v869 = vld [vmem:[#allocation11 + $0x10] sm:$0xf]
        %v870 = vld [vmem:[#allocation11 + $0x14] sm:$0xf]
        %v871 = vld [vmem:[#allocation11 + $0x18] sm:$0xf]
        %v872 = vld [vmem:[#allocation11 + $0x1c] sm:$0xf]
        %v873 = vld [vmem:[#allocation11 + $0x20] sm:$0xf]
        %v874 = vld [vmem:[#allocation11 + $0x24] sm:$0xf]
        %v875 = vld [vmem:[#allocation11 + $0x28] sm:$0xf]
        %v876 = vld [vmem:[#allocation11 + $0x2c] sm:$0xf]
        %v877 = vld [vmem:[#allocation11 + $0x30] sm:$0xf]
        %v878 = vld [vmem:[#allocation11 + $0x34] sm:$0xf]
        %v879 = vld [vmem:[#allocation11 + $0x38] sm:$0xf]
        %v880 = vld [vmem:[#allocation11 + $0x3c] sm:$0xf]
        %v881 = vld [vmem:[#allocation11 + $0x40] sm:$0xf]
        %v882 = vld [vmem:[#allocation11 + $0x44] sm:$0xf]
        %v883 = vld [vmem:[#allocation11 + $0x48] sm:$0xf]
        %v884 = vld [vmem:[#allocation11 + $0x4c] sm:$0xf]
        %v885 = vld [vmem:[#allocation11 + $0x50] sm:$0xf]
        %v886 = vld [vmem:[#allocation11 + $0x54] sm:$0xf]
        %v887 = vld [vmem:[#allocation11 + $0x58] sm:$0xf]
        %v888 = vld [vmem:[#allocation11 + $0x5c] sm:$0xf]
        %v889 = vld [vmem:[#allocation11 + $0x60] sm:$0xf]
        %v890 = vld [vmem:[#allocation11 + $0x64] sm:$0xf]
        %v891 = vld [vmem:[#allocation11 + $0x68] sm:$0xf]
        %v892 = vld [vmem:[#allocation11 + $0x6c] sm:$0xf]
        %v893 = vld [vmem:[#allocation11 + $0x70] sm:$0xf]
        %v894 = vld [vmem:[#allocation11 + $0x74] sm:$0xf]
        %v895 = vld [vmem:[#allocation11 + $0x78] sm:$0xf]
        %v896 = vld [vmem:[#allocation11 + $0x7c] sm:$0xf]
        %v897 = vld [vmem:[#allocation13 + $0x6] sm:$0x1]
        %v898 = vperm.slane %v897, 0
        %v931 = vunpack.c.l.b16 %v865
        %v932 = vunpack.c.l.b16 %v866
        %v933 = vunpack.c.l.b16 %v867
        %v934 = vunpack.c.l.b16 %v868
        %v935 = vunpack.c.l.b16 %v869
        %v936 = vunpack.c.l.b16 %v870
        %v937 = vunpack.c.l.b16 %v871
        %v938 = vunpack.c.l.b16 %v872
        %v939 = vunpack.c.l.b16 %v873
        %v940 = vunpack.c.l.b16 %v874
        %v941 = vunpack.c.l.b16 %v875
        %v942 = vunpack.c.l.b16 %v876
        %v943 = vunpack.c.l.b16 %v877
        %v944 = vunpack.c.l.b16 %v878
        %v945 = vunpack.c.l.b16 %v879
        %v946 = vunpack.c.l.b16 %v880
        %v947 = vunpack.c.l.b16 %v881
        %v948 = vunpack.c.l.b16 %v882
        %v949 = vunpack.c.l.b16 %v883
        %v950 = vunpack.c.l.b16 %v884
        %v951 = vunpack.c.l.b16 %v885
        %v952 = vunpack.c.l.b16 %v886
        %v953 = vunpack.c.l.b16 %v887
        %v954 = vunpack.c.l.b16 %v888
        %v955 = vunpack.c.l.b16 %v889
        %v956 = vunpack.c.l.b16 %v890
        %v957 = vunpack.c.l.b16 %v891
        %v958 = vunpack.c.l.b16 %v892
        %v959 = vunpack.c.l.b16 %v893
        %v960 = vunpack.c.l.b16 %v894
        %v961 = vunpack.c.l.b16 %v895
        %v962 = vunpack.c.l.b16 %v896
        %v963 = vpack.c.b16 %v932, %v931
        %v964 = vpack.c.b16 %v934, %v933
        %v965 = vpack.c.b16 %v936, %v935
        %v966 = vpack.c.b16 %v938, %v937
        %v967 = vpack.c.b16 %v940, %v939
        %v968 = vpack.c.b16 %v942, %v941
        %v969 = vpack.c.b16 %v944, %v943
        %v970 = vpack.c.b16 %v946, %v945
        %v971 = vpack.c.b16 %v948, %v947
        %v972 = vpack.c.b16 %v950, %v949
        %v973 = vpack.c.b16 %v952, %v951
        %v974 = vpack.c.b16 %v954, %v953
        %v975 = vpack.c.b16 %v956, %v955
        %v976 = vpack.c.b16 %v958, %v957
        %v977 = vpack.c.b16 %v960, %v959
        %v978 = vpack.c.b16 %v962, %v961
        %995 = vmatpush.bf16.msra.mxu0 %v970
        %996 = vmatpush.bf16.msra.mxu0 %v969
        %997 = vmatpush.bf16.msra.mxu0 %v968
        %998 = vmatpush.bf16.msra.mxu0 %v967
        %999 = vmatpush.bf16.msra.mxu0 %v966
        %1000 = vmatpush.bf16.msra.mxu0 %v965
        %1001 = vmatpush.bf16.msra.mxu0 %v964
        %1002 = vmatpush.bf16.msra.mxu0 %v963
        %1003 = vmatmul.bf16.gmra.mxu0 %v863
        %v1004 = vpop.f32.mrf.mxu0
        %v1005 = vadd.f32 %v898, %v1004
        %v1006 = vpop.f32.mrf.mxu0
        %v1007 = vadd.f32 %v898, %v1006
        %1008 = vdwg.mxu0
        %1009 = vmatpush.bf16.msra.mxu0 %v978
        %1010 = vmatpush.bf16.msra.mxu0 %v977
        %1011 = vmatpush.bf16.msra.mxu0 %v976
        %1012 = vmatpush.bf16.msra.mxu0 %v975
        %1013 = vmatpush.bf16.msra.mxu0 %v974
        %1014 = vmatpush.bf16.msra.mxu0 %v973
        %1015 = vmatpush.bf16.msra.mxu0 %v972
        %1016 = vmatpush.bf16.msra.mxu0 %v971
        %1017 = vmatmul.bf16.gmra.mxu0 %v864
        %v1018 = vpop.f32.mrf.mxu0
        %v1019 = vadd.f32 %v1005, %v1018
        %v1020 = vpop.f32.mrf.mxu0
        %v1021 = vadd.f32 %v1007, %v1020
        %1022 = vdwg.mxu0
        %v1023 = vadd.f32 %v1019, %v726
        %v1024 = vadd.f32 %v1021, %v727
        %v1025 = vld [vmem:[#allocation13 + $0x4] sm:$0x1]
        %v1026 = vld [vmem:[#allocation13 + $0x5] sm:$0x1]
        %1027 = vadd.xlane.f32.xlu0 %v1023
        %v1028 = vpop.xlane.xlu0 %1027
        %1029 = vadd.xlane.f32.xlu0 %v1024
        %v1030 = vpop.xlane.xlu0 %1029
        %v1031 = vmul.f32 %v1028, %v551
        %v1032 = vmul.f32 %v1030, %v551
        %v1033 = vsub.f32 %v1023, %v1031
        %v1034 = vsub.f32 %v1024, %v1032
        %v1035 = vmul.f32 %v1033, %v1033
        %v1036 = vmul.f32 %v1034, %v1034
        %1037 = vadd.xlane.f32.xlu0 %v1035
        %v1038 = vpop.xlane.xlu0 %1037
        %1039 = vadd.xlane.f32.xlu0 %v1036
        %v1040 = vpop.xlane.xlu0 %1039
        %v1041 = vmul.f32 %v1038, %v551
        %v1042 = vmul.f32 %v1040, %v551
        %v1043 = vadd.f32 %v1041, 1e-05
        %v1044 = vadd.f32 %v1042, 1e-05
        %v1045 = vrsqrt.pop %v1043
        %v1046 = vmul.f32 %v1045, %v1043
        %v1047 = vmul.f32 %v1046, %v1045
        %v1048 = vmul.f32 0.5, %v1047
        %v1049 = vsub.f32 1.5, %v1048
        %v1050 = vmul.f32 %v1045, %v1049
        %vm1051 = vweird.f32 %v1043
        %vm1052 = vweird.f32 %v1045
        %vm1053 = vmor %vm1051, %vm1052
        %v1054 = vsel %vm1053, %v1045, %v1050
        %v1055 = vrsqrt.pop %v1044
        %v1056 = vmul.f32 %v1055, %v1044
        %v1057 = vmul.f32 %v1056, %v1055
        %v1058 = vmul.f32 0.5, %v1057
        %v1059 = vsub.f32 1.5, %v1058
        %v1060 = vmul.f32 %v1055, %v1059
        %vm1061 = vweird.f32 %v1044
        %vm1062 = vweird.f32 %v1055
        %vm1063 = vmor %vm1061, %vm1062
        %v1064 = vsel %vm1063, %v1055, %v1060
        %v1065 = vmul.f32 %v1033, %v1054
        %v1066 = vmul.f32 %v1034, %v1064
        %v1067 = vperm.slane %v1025, 0
        %v1068 = vmul.f32 %v1065, %v1067
        %v1069 = vmul.f32 %v1066, %v1067
        %v1070 = vperm.slane %v1026, 0
        %v1071 = vadd.f32 %v1068, %v1070
        %v1072 = vadd.f32 %v1069, %v1070
        %1073 = vst [vmem:[%s447] sm:$0xff] %v1071
        %1074 = vst [vmem:[%s447 + $0x8] sm:$0xff] %v1072
        %s1075 = sand.u32 %s216, 1
        %s1076 = scalar_lea.sflag [#allocation4], %s1075
        %s1077 = sand.u32 %s216, 1
        %s1078 = smul.addr %s1077, 16
        %s1079 = scalar_lea.vmem [#allocation14], %s1078
        // Predicated region
        $region81: #{tpu_custom_call.1} parent=51 // pred_check
          %p1080 = pneg %p226
        $region82: #{tpu_custom_call.1} parent=51 // pred_check_branch
          %1082 = sbr.rel (%p1080) target = $region84
        $region83: #{tpu_custom_call.1} parent=51 // pred_region
          %s1083 = smul.u32 2, %s30
          %1085 = vsyncadd %s1076, 0
          %s1086 = smul.addr %s1083, 8
          %s1087 = scalar_lea.hbm %s8, %s1086
          %s1088 = sshll.u32 %s1079, 4
          %s1089 = int_to_ptr.vmem [resolvable:$true] %s1088
          %s1090 = sshll.u32 %s1087, 4
          %s1091 = int_to_ptr.hbm [resolvable:$true] %s1090
          %1096 = dma.vmem_to_hbm [thread:$0]  %s1089, 256, %s1091, %s1076, 128, 128, 8
        $region84: #{tpu_custom_call.1} parent=51 // pred_fallthru
          _
      $region52: #{tpu_custom_call.1} parent=5 // pred_fallthru
        _
      %p1097 = scmp.le.s32.totalorder 2, %s25
      // Predicated region
      $region85: #{tpu_custom_call.1} parent=5 // pred_check
        %p1098 = pneg %p1097
      $region86: #{tpu_custom_call.1} parent=5 // pred_check_branch
        %1100 = sbr.rel (%p1098) target = $region88
      $region87: #{tpu_custom_call.1} parent=5 // pred_region
        %s1101 = ssub.s32 %s25, 2
        // Predicated region
        $region89: #{tpu_custom_call.1} parent=87 // pred_check
          %p1102 = pneg %p232
        $region90: #{tpu_custom_call.1} parent=87 // pred_check_branch
          %1104 = sbr.rel (%p1102) target = $region92
        $region91: #{tpu_custom_call.1} parent=87 // pred_region
          %s1105 = sand.u32 %s217, 1
          %s1106 = scalar_lea.sflag [#allocation4], %s1105
          %s1107 = sand.u32 %s217, 1
          %s1108 = smul.addr %s1107, 16
          %s1109 = scalar_lea.vmem [#allocation14], %s1108
          %1111 = dma.done %s1106, 256
        $region92: #{tpu_custom_call.1} parent=87 // pred_fallthru
          _
      $region88: #{tpu_custom_call.1} parent=5 // pred_fallthru
        _
    $region6: #{tpu_custom_call.1} parent=1 // loop_footer
      %s29 = sadd.s32 1, %s25
    $region7: #{tpu_custom_call.1} parent=1 // loop_footer_branch
      %24 = sbr.rel target = $region3
    $region8: #{tpu_custom_call.1} parent=1 // loop_exit
      _
    %1112 = vsyncpa [#allocation3], 1
    %s1113 = scalar_lea.sflag [#allocation3], 1
    %1114 = vsyncpa %s1113, 1
    %1115 = vsyncpa [#allocation6], 1
    %s1116 = scalar_lea.sflag [#allocation6], 1
    %1117 = vsyncpa %s1116, 1
    %1118 = vsyncpa [#allocation9], 1
    %1119 = vsyncpa [#allocation12], 1
    %1120 = vsyncpa [#allocation4], 1
    %s1121 = scalar_lea.sflag [#allocation4], 1
    %1122 = vsyncpa %s1121, 1

// kernel: tpu_custom_call.1
$region0: #{tpu_custom_call.1}
  #allocation0 [shape = 'u32[]', space=smem, size = 0x4, offset = 0x4, fixed_abs, tag = 'smem constant byte address 0x4 - core index']
  #allocation1 [shape = 'u32[72,128]{1,0:T(1,128)}', space=vmem, size = 0x9000, scoped, tag = 'internal scratch']
  %s0 = inlined_call_operand.hbm [shape: bf16[32,128], index: 0, kind: input, shape index: {}]
  %s1 = inlined_call_operand.hbm [shape: bf16[32,128], index: 1, kind: input, shape index: {}]
  %s2 = inlined_call_operand.hbm [shape: bf16[128,128], index: 2, kind: input, shape index: {}]
  %s3 = inlined_call_operand.hbm [shape: bf16[128,128], index: 3, kind: input, shape index: {}]
  %s4 = inlined_call_operand.hbm [shape: bf16[128,256], index: 4, kind: input, shape index: {}]
  %s5 = inlined_call_operand.hbm [shape: bf16[256,128], index: 5, kind: input, shape index: {}]
  %s6 = inlined_call_operand.hbm [shape: f32[8,128], index: 6, kind: input, shape index: {}]
  %s7 = inlined_call_operand.vmem [shape: f32[1,256], index: 7, kind: input, shape index: {}]
  %s8 = inlined_call_operand.hbm [shape: f32[32,128], index: 8, kind: output, shape index: {}]
  %s9 = sld [smem:[#allocation0]]
  $region93: #{tpu_custom_call.1} parent=0
    _
  %s11 = ssub.s32 1, %s9
  %s12 = scalar_select 0, %s11, %s9
  $region1: #{tpu_custom_call.1} parent=0
    #allocation2 [shape = 'u8[8192]{0}', space=vmem, size = 0x2000, scoped, tag = 'input window, operand 0']
    #allocation3 [shape = 's32[2]{0}', space=sflag, size = 0x8, scoped, tag = 'scoped memory for tpu_custom_call.1']
    #allocation4 [shape = 's32[2]{0}', space=sflag, size = 0x8, scoped, tag = 'scoped memory for tpu_custom_call.1']
    #allocation5 [shape = 'u8[8192]{0}', space=vmem, size = 0x2000, scoped, tag = 'input window, operand 1']
    #allocation6 [shape = 's32[2]{0}', space=sflag, size = 0x8, scoped, tag = 'scoped memory for tpu_custom_call.1']
    #allocation7 [shape = 'u8[32768]{0}', space=vmem, size = 0x8000, scoped, tag = 'input window, operand 2, single buffered']
    #allocation8 [shape = 'u8[32768]{0}', space=vmem, size = 0x8000, scoped, tag = 'input window, operand 3, single buffered']
    #allocation9 [shape = 's32[1]{0}', space=sflag, size = 0x4, scoped, tag = 'scoped memory for tpu_custom_call.1']
    #allocation10 [shape = 'u8[65536]{0}', space=vmem, size = 0x10000, scoped, tag = 'input window, operand 4, single buffered']
    #allocation11 [shape = 'u8[65536]{0}', space=vmem, size = 0x10000, scoped, tag = 'input window, operand 5, single buffered']
    #allocation12 [shape = 's32[1]{0}', space=sflag, size = 0x4, scoped, tag = 'scoped memory for tpu_custom_call.1']
    #allocation13 [shape = 'u8[4096]{0}', space=vmem, size = 0x1000, scoped, tag = 'input window, operand 6, single buffered']
    #allocation14 [shape = 'u8[16384]{0}', space=vmem, size = 0x4000, scoped, tag = 'output window, operand 0']
    %13 = vsyncpa [#allocation3], 0
    %s14 = scalar_lea.sflag [#allocation3], 1
    %15 = vsyncpa %s14, 0
    %16 = vsyncpa [#allocation6], 0
    %s17 = scalar_lea.sflag [#allocation6], 1
    %18 = vsyncpa %s17, 0
    %19 = vsyncpa [#allocation9], 0
    %20 = vsyncpa [#allocation12], 0
    %21 = vsyncpa [#allocation4], 0
    %s22 = scalar_lea.sflag [#allocation4], 1
    %23 = vsyncpa %s22, 0
    loop: start=0, step=1, limit=4
    $region2: #{tpu_custom_call.1} parent=1 // loop_pre_header
      _
    $region3: #{tpu_custom_call.1} parent=1 // loop_header
      %s25 = sphi 0, %s29
      %p26 = scmp.ge.s32.totalorder %s25, 4
      %s35 = sphi 0, %s37
      %s38 = sphi 0, %s35
      %s39 = sphi 0, %s38
      %s55 = sphi 0, %s39
      %s61 = sphi 0, %s63
      %s64 = sphi 0, %s61
      %s65 = sphi 0, %s64
      %s81 = sphi 0, %s65
      %s85 = sphi 0, %s85
      %s87 = sphi 0, %s85
      %s88 = sphi 0, %s87
      %s102 = sphi 0, %s88
      %s106 = sphi 0, %s106
      %s108 = sphi 0, %s106
      %s109 = sphi 0, %s108
      %s123 = sphi 0, %s109
      %s127 = sphi 0, %s127
      %s129 = sphi 0, %s127
      %s130 = sphi 0, %s129
      %s144 = sphi 0, %s130
      %s148 = sphi 0, %s148
      %s150 = sphi 0, %s148
      %s151 = sphi 0, %s150
      %s165 = sphi 0, %s151
      %s169 = sphi 0, %s169
      %s171 = sphi 0, %s169
      %s172 = sphi 0, %s171
      %s186 = sphi 0, %s172
      %s190 = sphi 0, %s190
      %s192 = sphi 0, %s190
      %s193 = sphi 0, %s192
      %s207 = sphi 0, %s193
      %s213 = sphi 0, %s215
      %s216 = sphi 0, %s213
      %s217 = sphi 0, %s216
      %s233 = sphi 0, %s217
    $region4: #{tpu_custom_call.1} parent=1 // loop_header_branch
      %28 = sbr.rel (%p26) target = $region8
    $region5: #{tpu_custom_call.1} parent=1 // loop_body
      %s30 = ssub.s32 %s25, 1
      %s31 = ssub.s32 %s25, 2
      %s32 = sadd.s32 %s25, 1
      %s33 = ssub.s32 %s25, %s32
      %p34 = scmp.eq.s32.totalorder %s33, 0
      %s36 = sadd.s32 %s35, 1
      %s37 = scalar_select %p34, %s35, %s36
      %p40 = pneg %p34
      %p41 = scmp.eq.s32.totalorder %s25, 1
      %p42 = por %p40, %p41
      %p43 = scmp.ne.s32.totalorder %s35, %s38
      %p44 = scmp.eq.s32.totalorder %s25, 0
      %p45 = por %p43, %p44
      %p46 = scmp.ne.s32.totalorder %s35, %s38
      %p47 = scmp.eq.s32.totalorder %s30, 1
      %p48 = por %p46, %p47
      %p49 = scmp.ne.s32.totalorder %s38, %s39
      %p50 = scmp.eq.s32.totalorder %s30, 0
      %p51 = por %p49, %p50
      %p52 = scmp.ne.s32.totalorder %s38, %s39
      %p53 = scmp.eq.s32.totalorder %s31, 1
      %p54 = por %p52, %p53
      %p56 = scmp.ne.s32.totalorder %s39, %s55
      %p57 = scmp.eq.s32.totalorder %s31, 0
      %p58 = por %p56, %p57
      %s59 = ssub.s32 %s25, %s32
      %p60 = scmp.eq.s32.totalorder %s59, 0
      %s62 = sadd.s32 %s61, 1
      %s63 = scalar_select %p60, %s61, %s62
      %p66 = pneg %p60
      %p67 = scmp.eq.s32.totalorder %s25, 1
      %p68 = por %p66, %p67
      %p69 = scmp.ne.s32.totalorder %s61, %s64
      %p70 = scmp.eq.s32.totalorder %s25, 0
      %p71 = por %p69, %p70
      %p72 = scmp.ne.s32.totalorder %s61, %s64
      %p73 = scmp.eq.s32.totalorder %s30, 1
      %p74 = por %p72, %p73
      %p75 = scmp.ne.s32.totalorder %s64, %s65
      %p76 = scmp.eq.s32.totalorder %s30, 0
      %p77 = por %p75, %p76
      %p78 = scmp.ne.s32.totalorder %s64, %s65
      %p79 = scmp.eq.s32.totalorder %s31, 1
      %p80 = por %p78, %p79
      %p82 = scmp.ne.s32.totalorder %s65, %s81
      %p83 = scmp.eq.s32.totalorder %s31, 0
      %p84 = por %p82, %p83
      %s86 = sadd.s32 %s85, 1
      %p89 = scmp.eq.s32.totalorder %s25, 1
      %p90 = scmp.ne.s32.totalorder %s85, %s87
      %p91 = scmp.eq.s32.totalorder %s25, 0
      %p92 = por %p90, %p91
      %p93 = scmp.ne.s32.totalorder %s85, %s87
      %p94 = scmp.eq.s32.totalorder %s30, 1
      %p95 = por %p93, %p94
      %p96 = scmp.ne.s32.totalorder %s87, %s88
      %p97 = scmp.eq.s32.totalorder %s30, 0
      %p98 = por %p96, %p97
      %p99 = scmp.ne.s32.totalorder %s87, %s88
      %p100 = scmp.eq.s32.totalorder %s31, 1
      %p101 = por %p99, %p100
      %p103 = scmp.ne.s32.totalorder %s88, %s102
      %p104 = scmp.eq.s32.totalorder %s31, 0
      %p105 = por %p103, %p104
      %s107 = sadd.s32 %s106, 1
      %p110 = scmp.eq.s32.totalorder %s25, 1
      %p111 = scmp.ne.s32.totalorder %s106, %s108
      %p112 = scmp.eq.s32.totalorder %s25, 0
      %p113 = por %p111, %p112
      %p114 = scmp.ne.s32.totalorder %s106, %s108
      %p115 = scmp.eq.s32.totalorder %s30, 1
      %p116 = por %p114, %p115
      %p117 = scmp.ne.s32.totalorder %s108, %s109
      %p118 = scmp.eq.s32.totalorder %s30, 0
      %p119 = por %p117, %p118
      %p120 = scmp.ne.s32.totalorder %s108, %s109
      %p121 = scmp.eq.s32.totalorder %s31, 1
      %p122 = por %p120, %p121
      %p124 = scmp.ne.s32.totalorder %s109, %s123
      %p125 = scmp.eq.s32.totalorder %s31, 0
      %p126 = por %p124, %p125
      %s128 = sadd.s32 %s127, 1
      %p131 = scmp.eq.s32.totalorder %s25, 1
      %p132 = scmp.ne.s32.totalorder %s127, %s129
      %p133 = scmp.eq.s32.totalorder %s25, 0
      %p134 = por %p132, %p133
      %p135 = scmp.ne.s32.totalorder %s127, %s129
      %p136 = scmp.eq.s32.totalorder %s30, 1
      %p137 = por %p135, %p136
      %p138 = scmp.ne.s32.totalorder %s129, %s130
      %p139 = scmp.eq.s32.totalorder %s30, 0
      %p140 = por %p138, %p139
      %p141 = scmp.ne.s32.totalorder %s129, %s130
      %p142 = scmp.eq.s32.totalorder %s31, 1
      %p143 = por %p141, %p142
      %p145 = scmp.ne.s32.totalorder %s130, %s144
      %p146 = scmp.eq.s32.totalorder %s31, 0
      %p147 = por %p145, %p146
      %s149 = sadd.s32 %s148, 1
      %p152 = scmp.eq.s32.totalorder %s25, 1
      %p153 = scmp.ne.s32.totalorder %s148, %s150
      %p154 = scmp.eq.s32.totalorder %s25, 0
      %p155 = por %p153, %p154
      %p156 = scmp.ne.s32.totalorder %s148, %s150
      %p157 = scmp.eq.s32.totalorder %s30, 1
      %p158 = por %p156, %p157
      %p159 = scmp.ne.s32.totalorder %s150, %s151
      %p160 = scmp.eq.s32.totalorder %s30, 0
      %p161 = por %p159, %p160
      %p162 = scmp.ne.s32.totalorder %s150, %s151
      %p163 = scmp.eq.s32.totalorder %s31, 1
      %p164 = por %p162, %p163
      %p166 = scmp.ne.s32.totalorder %s151, %s165
      %p167 = scmp.eq.s32.totalorder %s31, 0
      %p168 = por %p166, %p167
      %s170 = sadd.s32 %s169, 1
      %p173 = scmp.eq.s32.totalorder %s25, 1
      %p174 = scmp.ne.s32.totalorder %s169, %s171
      %p175 = scmp.eq.s32.totalorder %s25, 0
      %p176 = por %p174, %p175
      %p177 = scmp.ne.s32.totalorder %s169, %s171
      %p178 = scmp.eq.s32.totalorder %s30, 1
      %p179 = por %p177, %p178
      %p180 = scmp.ne.s32.totalorder %s171, %s172
      %p181 = scmp.eq.s32.totalorder %s30, 0
      %p182 = por %p180, %p181
      %p183 = scmp.ne.s32.totalorder %s171, %s172
      %p184 = scmp.eq.s32.totalorder %s31, 1
      %p185 = por %p183, %p184
      %p187 = scmp.ne.s32.totalorder %s172, %s186
      %p188 = scmp.eq.s32.totalorder %s31, 0
      %p189 = por %p187, %p188
      %s191 = sadd.s32 %s190, 1
      %p194 = scmp.eq.s32.totalorder %s25, 1
      %p195 = scmp.ne.s32.totalorder %s190, %s192
      %p196 = scmp.eq.s32.totalorder %s25, 0
      %p197 = por %p195, %p196
      %p198 = scmp.ne.s32.totalorder %s190, %s192
      %p199 = scmp.eq.s32.totalorder %s30, 1
      %p200 = por %p198, %p199
      %p201 = scmp.ne.s32.totalorder %s192, %s193
      %p202 = scmp.eq.s32.totalorder %s30, 0
      %p203 = por %p201, %p202
      %p204 = scmp.ne.s32.totalorder %s192, %s193
      %p205 = scmp.eq.s32.totalorder %s31, 1
      %p206 = por %p204, %p205
      %p208 = scmp.ne.s32.totalorder %s193, %s207
      %p209 = scmp.eq.s32.totalorder %s31, 0
      %p210 = por %p208, %p209
      %s211 = ssub.s32 %s25, %s32
      %p212 = scmp.eq.s32.totalorder %s211, 0
      %s214 = sadd.s32 %s213, 1
      %s215 = scalar_select %p212, %s213, %s214
      %p218 = pneg %p212
      %p219 = scmp.eq.s32.totalorder %s25, 1
      %p220 = por %p218, %p219
      %p221 = scmp.ne.s32.totalorder %s213, %s216
      %p222 = scmp.eq.s32.totalorder %s25, 0
      %p223 = por %p221, %p222
      %p224 = scmp.ne.s32.totalorder %s213, %s216
      %p225 = scmp.eq.s32.totalorder %s30, 1
      %p226 = por %p224, %p225
      %p227 = scmp.ne.s32.totalorder %s216, %s217
      %p228 = scmp.eq.s32.totalorder %s30, 0
      %p229 = por %p227, %p228
      %p230 = scmp.ne.s32.totalorder %s216, %s217
      %p231 = scmp.eq.s32.totalorder %s31, 1
      %p232 = por %p230, %p231
      %p234 = scmp.ne.s32.totalorder %s217, %s233
      %p235 = scmp.eq.s32.totalorder %s31, 0
      %p236 = por %p234, %p235
      %p237 = scmp.le.s32.totalorder 1, %s25
      %p238 = scmp.lt.s32.totalorder %s25, 3
      %p239 = pnand %p237, %p238
      %p240 = pneg %p239
      // Predicated region
      $region9: #{tpu_custom_call.1} parent=5 // pred_check
        _
      $region10: #{tpu_custom_call.1} parent=5 // pred_check_branch
        %242 = sbr.rel (%p239) target = $region12
      $region11: #{tpu_custom_call.1} parent=5 // pred_region
        %s243 = ssub.s32 %s25, 1
        // Predicated region
        $region13: #{tpu_custom_call.1} parent=11 // pred_check
          %p244 = pneg %p98
        $region14: #{tpu_custom_call.1} parent=11 // pred_check_branch
          %246 = sbr.rel (%p244) target = $region16
        $region15: #{tpu_custom_call.1} parent=11 // pred_region
          %248 = vsyncadd [#allocation6], 0
          %s249 = sshll.u32 %s2, 4
          %s250 = int_to_ptr.hbm [resolvable:$true] %s249
          %s251 = sshll.u32 [#allocation7], 4
          %s252 = int_to_ptr.vmem [resolvable:$true] %s251
          %257 = dma.hbm_to_vmem [thread:$0]  %s250, 1024, %s252, [#allocation6], 64, 64, 4
        $region16: #{tpu_custom_call.1} parent=11 // pred_fallthru
          _
        // Predicated region
        $region17: #{tpu_custom_call.1} parent=11 // pred_check
          %p258 = pneg %p119
        $region18: #{tpu_custom_call.1} parent=11 // pred_check_branch
          %260 = sbr.rel (%p258) target = $region20
        $region19: #{tpu_custom_call.1} parent=11 // pred_region
          %262 = vsyncadd [#allocation9], 0
          %s263 = sshll.u32 %s3, 4
          %s264 = int_to_ptr.hbm [resolvable:$true] %s263
          %s265 = sshll.u32 [#allocation8], 4
          %s266 = int_to_ptr.vmem [resolvable:$true] %s265
          %271 = dma.hbm_to_vmem [thread:$0]  %s264, 1024, %s266, [#allocation9], 64, 64, 4
        $region20: #{tpu_custom_call.1} parent=11 // pred_fallthru
          _
        // Predicated region
        $region21: #{tpu_custom_call.1} parent=11 // pred_check
          %p272 = pneg %p140
        $region22: #{tpu_custom_call.1} parent=11 // pred_check_branch
          %274 = sbr.rel (%p272) target = $region24
        $region23: #{tpu_custom_call.1} parent=11 // pred_region
          %276 = vsyncadd [#allocation9], 0
          %s277 = sshll.u32 %s4, 4
          %s278 = int_to_ptr.hbm [resolvable:$true] %s277
          %s279 = sshll.u32 [#allocation10], 4
          %s280 = int_to_ptr.vmem [resolvable:$true] %s279
          %285 = dma.hbm_to_vmem [thread:$0]  %s278, 2048, %s280, [#allocation9], 128, 128, 8
        $region24: #{tpu_custom_call.1} parent=11 // pred_fallthru
          _
        // Predicated region
        $region25: #{tpu_custom_call.1} parent=11 // pred_check
          %p286 = pneg %p161
        $region26: #{tpu_custom_call.1} parent=11 // pred_check_branch
          %288 = sbr.rel (%p286) target = $region28
        $region27: #{tpu_custom_call.1} parent=11 // pred_region
          %290 = vsyncadd [#allocation12], 0
          %s291 = sshll.u32 %s5, 4
          %s292 = int_to_ptr.hbm [resolvable:$true] %s291
          %s293 = sshll.u32 [#allocation11], 4
          %s294 = int_to_ptr.vmem [resolvable:$true] %s293
          %299 = dma.hbm_to_vmem [thread:$0]  %s292, 2048, %s294, [#allocation12], 64, 64, 4
        $region28: #{tpu_custom_call.1} parent=11 // pred_fallthru
          _
        // Predicated region
        $region29: #{tpu_custom_call.1} parent=11 // pred_check
          %p300 = pneg %p182
        $region30: #{tpu_custom_call.1} parent=11 // pred_check_branch
          %302 = sbr.rel (%p300) target = $region32
        $region31: #{tpu_custom_call.1} parent=11 // pred_region
          %304 = vsyncadd [#allocation12], 0
          %s306 = sshll.u32 %s6, 4
          %s307 = int_to_ptr.hbm [resolvable:$true] %s306
          %s308 = sshll.u32 [#allocation13], 4
          %s309 = int_to_ptr.vmem [resolvable:$true] %s308
          %311 = dma.hbm_to_vmem [thread:$0]  %s307, 128, %s309, [#allocation12]
        $region32: #{tpu_custom_call.1} parent=11 // pred_fallthru
          _
        // Predicated region
        $region33: #{tpu_custom_call.1} parent=11 // pred_check
          %p312 = pneg %p203
        $region34: #{tpu_custom_call.1} parent=11 // pred_check_branch
          %314 = sbr.rel (%p312) target = $region36
        $region35: #{tpu_custom_call.1} parent=11 // pred_region
          _
        $region36: #{tpu_custom_call.1} parent=11 // pred_fallthru
          _
      $region12: #{tpu_custom_call.1} parent=5 // pred_fallthru
        _
      %p315 = scmp.lt.s32.totalorder %s25, 2
      // Predicated region
      $region37: #{tpu_custom_call.1} parent=5 // pred_check
        %p316 = pneg %p315
      $region38: #{tpu_custom_call.1} parent=5 // pred_check_branch
        %318 = sbr.rel (%p316) target = $region40
      $region39: #{tpu_custom_call.1} parent=5 // pred_region
        // Predicated region
        $region41: #{tpu_custom_call.1} parent=39 // pred_check
          %p319 = pneg %p45
        $region42: #{tpu_custom_call.1} parent=39 // pred_check_branch
          %321 = sbr.rel (%p319) target = $region44
        $region43: #{tpu_custom_call.1} parent=39 // pred_region
          %s322 = sand.u32 %s35, 1
          %s323 = scalar_lea.sflag [#allocation3], %s322
          %s324 = sand.u32 %s35, 1
          %s325 = smul.addr %s324, 8
          %s326 = scalar_lea.vmem [#allocation2], %s325
          %s327 = smul.u32 2, %s25
          %329 = vsyncadd %s323, 0
          %s330 = smul.addr %s327, 4
          %s331 = scalar_lea.hbm %s0, %s330
          %s332 = sshll.u32 %s331, 4
          %s333 = int_to_ptr.hbm [resolvable:$true] %s332
          %s334 = sshll.u32 %s326, 4
          %s335 = int_to_ptr.vmem [resolvable:$true] %s334
          %340 = dma.hbm_to_vmem [thread:$0]  %s333, 128, %s335, %s323, 64, 64, 4
        $region44: #{tpu_custom_call.1} parent=39 // pred_fallthru
          _
        // Predicated region
        $region45: #{tpu_custom_call.1} parent=39 // pred_check
          %p341 = pneg %p71
        $region46: #{tpu_custom_call.1} parent=39 // pred_check_branch
          %343 = sbr.rel (%p341) target = $region48
        $region47: #{tpu_custom_call.1} parent=39 // pred_region
          %s344 = sand.u32 %s25, 1
          %s345 = scalar_lea.sflag [#allocation6], %s344
          %s346 = sand.u32 %s61, 1
          %s347 = smul.addr %s346, 8
          %s348 = scalar_lea.vmem [#allocation5], %s347
          %s349 = smul.u32 2, %s25
          %351 = vsyncadd %s345, 0
          %s352 = smul.addr %s349, 4
          %s353 = scalar_lea.hbm %s1, %s352
          %s354 = sshll.u32 %s353, 4
          %s355 = int_to_ptr.hbm [resolvable:$true] %s354
          %s356 = sshll.u32 %s348, 4
          %s357 = int_to_ptr.vmem [resolvable:$true] %s356
          %362 = dma.hbm_to_vmem [thread:$0]  %s355, 128, %s357, %s345, 64, 64, 4
        $region48: #{tpu_custom_call.1} parent=39 // pred_fallthru
          _
      $region40: #{tpu_custom_call.1} parent=5 // pred_fallthru
        _
      %p363 = scmp.le.s32.totalorder 1, %s25
      %p364 = scmp.lt.s32.totalorder %s25, 3
      %p365 = pnand %p363, %p364
      %p366 = pneg %p365
      // Predicated region
      $region49: #{tpu_custom_call.1} parent=5 // pred_check
        _
      $region50: #{tpu_custom_call.1} parent=5 // pred_check_branch
        %368 = sbr.rel (%p365) target = $region52
      $region51: #{tpu_custom_call.1} parent=5 // pred_region
        %s369 = ssub.s32 %s25, 1
        %s370 = sand.u32 %s38, 1
        %s371 = scalar_lea.sflag [#allocation3], %s370
        %s372 = sand.u32 %s38, 1
        %s373 = smul.addr %s372, 8
        %s374 = scalar_lea.vmem [#allocation2], %s373
        // Predicated region
        $region53: #{tpu_custom_call.1} parent=51 // pred_check
          %p375 = pneg %p51
        $region54: #{tpu_custom_call.1} parent=51 // pred_check_branch
          %377 = sbr.rel (%p375) target = $region56
        $region55: #{tpu_custom_call.1} parent=51 // pred_region
          %379 = dma.done %s371, 128
        $region56: #{tpu_custom_call.1} parent=51 // pred_fallthru
          _
        %s380 = sand.u32 %s30, 1
        %s381 = scalar_lea.sflag [#allocation6], %s380
        %s382 = sand.u32 %s64, 1
        %s383 = smul.addr %s382, 8
        %s384 = scalar_lea.vmem [#allocation5], %s383
        // Predicated region
        $region57: #{tpu_custom_call.1} parent=51 // pred_check
          %p385 = pneg %p77
        $region58: #{tpu_custom_call.1} parent=51 // pred_check_branch
          %387 = sbr.rel (%p385) target = $region60
        $region59: #{tpu_custom_call.1} parent=51 // pred_region
          %389 = dma.done %s381, 128
        $region60: #{tpu_custom_call.1} parent=51 // pred_fallthru
          _
        // Predicated region
        $region61: #{tpu_custom_call.1} parent=51 // pred_check
          %p390 = pneg %p98
        $region62: #{tpu_custom_call.1} parent=51 // pred_check_branch
          %392 = sbr.rel (%p390) target = $region64
        $region63: #{tpu_custom_call.1} parent=51 // pred_region
          %394 = dma.done [#allocation6], 1024
        $region64: #{tpu_custom_call.1} parent=51 // pred_fallthru
          _
        // Predicated region
        $region65: #{tpu_custom_call.1} parent=51 // pred_check
          %p395 = pneg %p119
        $region66: #{tpu_custom_call.1} parent=51 // pred_check_branch
          %397 = sbr.rel (%p395) target = $region68
        $region67: #{tpu_custom_call.1} parent=51 // pred_region
          %399 = dma.done [#allocation9], 1024
        $region68: #{tpu_custom_call.1} parent=51 // pred_fallthru
          _
        // Predicated region
        $region69: #{tpu_custom_call.1} parent=51 // pred_check
          %p400 = pneg %p140
        $region70: #{tpu_custom_call.1} parent=51 // pred_check_branch
          %402 = sbr.rel (%p400) target = $region72
        $region71: #{tpu_custom_call.1} parent=51 // pred_region
          %404 = dma.done [#allocation9], 2048
        $region72: #{tpu_custom_call.1} parent=51 // pred_fallthru
          _
        // Predicated region
        $region73: #{tpu_custom_call.1} parent=51 // pred_check
          %p405 = pneg %p161
        $region74: #{tpu_custom_call.1} parent=51 // pred_check_branch
          %407 = sbr.rel (%p405) target = $region76
        $region75: #{tpu_custom_call.1} parent=51 // pred_region
          %409 = dma.done [#allocation12], 2048
        $region76: #{tpu_custom_call.1} parent=51 // pred_fallthru
          _
        // Predicated region
        $region77: #{tpu_custom_call.1} parent=51 // pred_check
          %p410 = pneg %p182
        $region78: #{tpu_custom_call.1} parent=51 // pred_check_branch
          %412 = sbr.rel (%p410) target = $region80
        $region79: #{tpu_custom_call.1} parent=51 // pred_region
          %414 = dma.done [#allocation12], 128
        $region80: #{tpu_custom_call.1} parent=51 // pred_fallthru
          _
        %s415 = sand.u32 %s38, 1
        %s416 = scalar_lea.sflag [#allocation3], %s415
        %s417 = sand.u32 %s38, 1
        %s418 = smul.addr %s417, 8
        %s419 = scalar_lea.vmem [#allocation2], %s418
        %p420 = pneg %p51
        %p421 = pneg %p48
        %s422 = sand.u32 %s30, 1
        %s423 = scalar_lea.sflag [#allocation6], %s422
        %s424 = sand.u32 %s64, 1
        %s425 = smul.addr %s424, 8
        %s426 = scalar_lea.vmem [#allocation5], %s425
        %p427 = pneg %p77
        %p428 = pneg %p74
        %p429 = pneg %p98
        %p430 = pneg %p95
        %p431 = pneg %p119
        %p432 = pneg %p116
        %p433 = pneg %p140
        %p434 = pneg %p137
        %p435 = pneg %p161
        %p436 = pneg %p158
        %p437 = pneg %p182
        %p438 = pneg %p179
        %p439 = pneg %p203
        %p440 = pneg %p200
        %p441 = pneg %p229
        %p442 = pneg %p226
        %s443 = sand.u32 %s216, 1
        %s444 = scalar_lea.sflag [#allocation4], %s443
        %s445 = sand.u32 %s216, 1
        %s446 = smul.addr %s445, 16
        %s447 = scalar_lea.vmem [#allocation14], %s446
        %s448 = smul.u32 2, %s30
        %s449 = smul.u32 2, %s30
        %s450 = smul.u32 2, %s30
        %v451 = vld [vmem:[%s374] sm:$0xf]
        %v452 = vld [vmem:[%s374 + $0x4] sm:$0xf]
        %v453 = vld [vmem:[#allocation7] sm:$0xf]
        %v454 = vld [vmem:[#allocation7 + $0x4] sm:$0xf]
        %v455 = vld [vmem:[#allocation7 + $0x8] sm:$0xf]
        %v456 = vld [vmem:[#allocation7 + $0xc] sm:$0xf]
        %v457 = vld [vmem:[#allocation7 + $0x10] sm:$0xf]
        %v458 = vld [vmem:[#allocation7 + $0x14] sm:$0xf]
        %v459 = vld [vmem:[#allocation7 + $0x18] sm:$0xf]
        %v460 = vld [vmem:[#allocation7 + $0x1c] sm:$0xf]
        %v461 = vld [vmem:[#allocation7 + $0x20] sm:$0xf]
        %v462 = vld [vmem:[#allocation7 + $0x24] sm:$0xf]
        %v463 = vld [vmem:[#allocation7 + $0x28] sm:$0xf]
        %v464 = vld [vmem:[#allocation7 + $0x2c] sm:$0xf]
        %v465 = vld [vmem:[#allocation7 + $0x30] sm:$0xf]
        %v466 = vld [vmem:[#allocation7 + $0x34] sm:$0xf]
        %v467 = vld [vmem:[#allocation7 + $0x38] sm:$0xf]
        %v468 = vld [vmem:[#allocation7 + $0x3c] sm:$0xf]
        %v469 = vld [vmem:[#allocation13] sm:$0x1]
        %v470 = vperm.slane %v469, 0
        %v473 = vunpack.c.l.b16 %v451
        %v474 = vunpack.c.l.b16 %v452
        %v475 = vpack.c.b16 %v474, %v473
        %v493 = vunpack.c.l.b16 %v453
        %v494 = vunpack.c.l.b16 %v454
        %v495 = vunpack.c.l.b16 %v455
        %v496 = vunpack.c.l.b16 %v456
        %v497 = vunpack.c.l.b16 %v457
        %v498 = vunpack.c.l.b16 %v458
        %v499 = vunpack.c.l.b16 %v459
        %v500 = vunpack.c.l.b16 %v460
        %v501 = vunpack.c.l.b16 %v461
        %v502 = vunpack.c.l.b16 %v462
        %v503 = vunpack.c.l.b16 %v463
        %v504 = vunpack.c.l.b16 %v464
        %v505 = vunpack.c.l.b16 %v465
        %v506 = vunpack.c.l.b16 %v466
        %v507 = vunpack.c.l.b16 %v467
        %v508 = vunpack.c.l.b16 %v468
        %v509 = vpack.c.b16 %v494, %v493
        %v510 = vpack.c.b16 %v496, %v495
        %v511 = vpack.c.b16 %v498, %v497
        %v512 = vpack.c.b16 %v500, %v499
        %v513 = vpack.c.b16 %v502, %v501
        %v514 = vpack.c.b16 %v504, %v503
        %v515 = vpack.c.b16 %v506, %v505
        %v516 = vpack.c.b16 %v508, %v507
        %525 = vmatpush.bf16.msra.mxu0 %v516
        %526 = vmatpush.bf16.msra.mxu0 %v515
        %527 = vmatpush.bf16.msra.mxu0 %v514
        %528 = vmatpush.bf16.msra.mxu0 %v513
        %529 = vmatpush.bf16.msra.mxu0 %v512
        %530 = vmatpush.bf16.msra.mxu0 %v511
        %531 = vmatpush.bf16.msra.mxu0 %v510
        %532 = vmatpush.bf16.msra.mxu0 %v509
        %533 = vmatmul.bf16.gmra.mxu0 %v475
        %v534 = vpop.f32.mrf.mxu0
        %v535 = vadd.f32 %v470, %v534
        %v536 = vpop.f32.mrf.mxu0
        %v537 = vadd.f32 %v470, %v536
        %538 = vdwg.mxu0
        %v539 = vld [vmem:[#allocation13 + $0x2] sm:$0x1]
        %v540 = vld [vmem:[#allocation13 + $0x3] sm:$0x1]
        %541 = vadd.xlane.f32.xlu0 %v535
        %v542 = vpop.xlane.xlu0 %541
        %543 = vadd.xlane.f32.xlu0 %v537
        %v544 = vpop.xlane.xlu0 %543
        %v545 = vrcp.pop 128.0
        %v546 = vmul.f32 128.0, %v545
        %v547 = vsub.f32 1.0, %v546
        %v548 = vmul.f32 %v545, %v547
        %v549 = vadd.f32 %v545, %v548
        %vm550 = vweird.f32 %v545
        %v551 = vsel %vm550, %v545, %v549
        %v552 = vmul.f32 %v542, %v551
        %v553 = vmul.f32 %v544, %v551
        %v554 = vsub.f32 %v535, %v552
        %v555 = vsub.f32 %v537, %v553
        %v556 = vmul.f32 %v554, %v554
        %v557 = vmul.f32 %v555, %v555
        %558 = vadd.xlane.f32.xlu0 %v556
        %v559 = vpop.xlane.xlu0 %558
        %560 = vadd.xlane.f32.xlu0 %v557
        %v561 = vpop.xlane.xlu0 %560
        %v562 = vmul.f32 %v559, %v551
        %v563 = vmul.f32 %v561, %v551
        %v564 = vadd.f32 %v562, 1e-05
        %v565 = vadd.f32 %v563, 1e-05
        %v566 = vrsqrt.pop %v564
        %v567 = vmul.f32 %v566, %v564
        %v568 = vmul.f32 %v567, %v566
        %v569 = vmul.f32 0.5, %v568
        %v570 = vsub.f32 1.5, %v569
        %v571 = vmul.f32 %v566, %v570
        %vm572 = vweird.f32 %v564
        %vm573 = vweird.f32 %v566
        %vm574 = vmor %vm572, %vm573
        %v575 = vsel %vm574, %v566, %v571
        %v576 = vrsqrt.pop %v565
        %v577 = vmul.f32 %v576, %v565
        %v578 = vmul.f32 %v577, %v576
        %v579 = vmul.f32 0.5, %v578
        %v580 = vsub.f32 1.5, %v579
        %v581 = vmul.f32 %v576, %v580
        %vm582 = vweird.f32 %v565
        %vm583 = vweird.f32 %v576
        %vm584 = vmor %vm582, %vm583
        %v585 = vsel %vm584, %v576, %v581
        %v586 = vmul.f32 %v554, %v575
        %v587 = vmul.f32 %v555, %v585
        %v588 = vperm.slane %v539, 0
        %v589 = vmul.f32 %v586, %v588
        %v590 = vmul.f32 %v587, %v588
        %v591 = vperm.slane %v540, 0
        %v592 = vadd.f32 %v589, %v591
        %v593 = vadd.f32 %v590, %v591
        %v594 = vld [vmem:[%s384] sm:$0xf]
        %v595 = vld [vmem:[%s384 + $0x4] sm:$0xf]
        %v596 = vld [vmem:[#allocation8] sm:$0xf]
        %v597 = vld [vmem:[#allocation8 + $0x4] sm:$0xf]
        %v598 = vld [vmem:[#allocation8 + $0x8] sm:$0xf]
        %v599 = vld [vmem:[#allocation8 + $0xc] sm:$0xf]
        %v600 = vld [vmem:[#allocation8 + $0x10] sm:$0xf]
        %v601 = vld [vmem:[#allocation8 + $0x14] sm:$0xf]
        %v602 = vld [vmem:[#allocation8 + $0x18] sm:$0xf]
        %v603 = vld [vmem:[#allocation8 + $0x1c] sm:$0xf]
        %v604 = vld [vmem:[#allocation8 + $0x20] sm:$0xf]
        %v605 = vld [vmem:[#allocation8 + $0x24] sm:$0xf]
        %v606 = vld [vmem:[#allocation8 + $0x28] sm:$0xf]
        %v607 = vld [vmem:[#allocation8 + $0x2c] sm:$0xf]
        %v608 = vld [vmem:[#allocation8 + $0x30] sm:$0xf]
        %v609 = vld [vmem:[#allocation8 + $0x34] sm:$0xf]
        %v610 = vld [vmem:[#allocation8 + $0x38] sm:$0xf]
        %v611 = vld [vmem:[#allocation8 + $0x3c] sm:$0xf]
        %v612 = vld [vmem:[#allocation13 + $0x1] sm:$0x1]
        %v613 = vperm.slane %v612, 0
        %v616 = vunpack.c.l.b16 %v594
        %v617 = vunpack.c.l.b16 %v595
        %v618 = vpack.c.b16 %v617, %v616
        %v636 = vunpack.c.l.b16 %v596
        %v637 = vunpack.c.l.b16 %v597
        %v638 = vunpack.c.l.b16 %v598
        %v639 = vunpack.c.l.b16 %v599
        %v640 = vunpack.c.l.b16 %v600
        %v641 = vunpack.c.l.b16 %v601
        %v642 = vunpack.c.l.b16 %v602
        %v643 = vunpack.c.l.b16 %v603
        %v644 = vunpack.c.l.b16 %v604
        %v645 = vunpack.c.l.b16 %v605
        %v646 = vunpack.c.l.b16 %v606
        %v647 = vunpack.c.l.b16 %v607
        %v648 = vunpack.c.l.b16 %v608
        %v649 = vunpack.c.l.b16 %v609
        %v650 = vunpack.c.l.b16 %v610
        %v651 = vunpack.c.l.b16 %v611
        %v652 = vpack.c.b16 %v637, %v636
        %v653 = vpack.c.b16 %v639, %v638
        %v654 = vpack.c.b16 %v641, %v640
        %v655 = vpack.c.b16 %v643, %v642
        %v656 = vpack.c.b16 %v645, %v644
        %v657 = vpack.c.b16 %v647, %v646
        %v658 = vpack.c.b16 %v649, %v648
        %v659 = vpack.c.b16 %v651, %v650
        %668 = vmatpush.bf16.msra.mxu0 %v659
        %669 = vmatpush.bf16.msra.mxu0 %v658
        %670 = vmatpush.bf16.msra.mxu0 %v657
        %671 = vmatpush.bf16.msra.mxu0 %v656
        %672 = vmatpush.bf16.msra.mxu0 %v655
        %673 = vmatpush.bf16.msra.mxu0 %v654
        %674 = vmatpush.bf16.msra.mxu0 %v653
        %675 = vmatpush.bf16.msra.mxu0 %v652
        %676 = vmatmul.bf16.gmra.mxu0 %v618
        %v677 = vpop.f32.mrf.mxu0
        %v678 = vadd.f32 %v613, %v677
        %v679 = vpop.f32.mrf.mxu0
        %v680 = vadd.f32 %v613, %v679
        %681 = vdwg.mxu0
        %v682 = vadd.f32 %v678, %v592
        %v683 = vadd.f32 %v680, %v593
        %684 = vadd.xlane.f32.xlu0 %v682
        %v685 = vpop.xlane.xlu0 %684
        %686 = vadd.xlane.f32.xlu0 %v683
        %v687 = vpop.xlane.xlu0 %686
        %v688 = vmul.f32 %v685, %v551
        %v689 = vmul.f32 %v687, %v551
        %v690 = vsub.f32 %v682, %v688
        %v691 = vsub.f32 %v683, %v689
        %v692 = vmul.f32 %v690, %v690
        %v693 = vmul.f32 %v691, %v691
        %694 = vadd.xlane.f32.xlu0 %v692
        %v695 = vpop.xlane.xlu0 %694
        %696 = vadd.xlane.f32.xlu0 %v693
        %v697 = vpop.xlane.xlu0 %696
        %v698 = vmul.f32 %v695, %v551
        %v699 = vmul.f32 %v697, %v551
        %v700 = vadd.f32 %v698, 1e-05
        %v701 = vadd.f32 %v699, 1e-05
        %v702 = vrsqrt.pop %v700
        %v703 = vmul.f32 %v702, %v700
        %v704 = vmul.f32 %v703, %v702
        %v705 = vmul.f32 0.5, %v704
        %v706 = vsub.f32 1.5, %v705
        %v707 = vmul.f32 %v702, %v706
        %vm708 = vweird.f32 %v700
        %vm709 = vweird.f32 %v702
        %vm710 = vmor %vm708, %vm709
        %v711 = vsel %vm710, %v702, %v707
        %v712 = vrsqrt.pop %v701
        %v713 = vmul.f32 %v712, %v701
        %v714 = vmul.f32 %v713, %v712
        %v715 = vmul.f32 0.5, %v714
        %v716 = vsub.f32 1.5, %v715
        %v717 = vmul.f32 %v712, %v716
        %vm718 = vweird.f32 %v701
        %vm719 = vweird.f32 %v712
        %vm720 = vmor %vm718, %vm719
        %v721 = vsel %vm720, %v712, %v717
        %v722 = vmul.f32 %v690, %v711
        %v723 = vmul.f32 %v691, %v721
        %v724 = vmul.f32 %v722, %v588
        %v725 = vmul.f32 %v723, %v588
        %v726 = vadd.f32 %v724, %v591
        %v727 = vadd.f32 %v725, %v591
        %v728 = vpack.c.bf16 %v727, %v726
        %v729 = vld [vmem:[#allocation10] sm:$0xff]
        %v730 = vld [vmem:[#allocation10 + $0x8] sm:$0xff]
        %v731 = vld [vmem:[#allocation10 + $0x10] sm:$0xff]
        %v732 = vld [vmem:[#allocation10 + $0x18] sm:$0xff]
        %v733 = vld [vmem:[#allocation10 + $0x20] sm:$0xff]
        %v734 = vld [vmem:[#allocation10 + $0x28] sm:$0xff]
        %v735 = vld [vmem:[#allocation10 + $0x30] sm:$0xff]
        %v736 = vld [vmem:[#allocation10 + $0x38] sm:$0xff]
        %v737 = vld [vmem:[#allocation10 + $0x40] sm:$0xff]
        %v738 = vld [vmem:[#allocation10 + $0x48] sm:$0xff]
        %v739 = vld [vmem:[#allocation10 + $0x50] sm:$0xff]
        %v740 = vld [vmem:[#allocation10 + $0x58] sm:$0xff]
        %v741 = vld [vmem:[#allocation10 + $0x60] sm:$0xff]
        %v742 = vld [vmem:[#allocation10 + $0x68] sm:$0xff]
        %v743 = vld [vmem:[#allocation10 + $0x70] sm:$0xff]
        %v744 = vld [vmem:[#allocation10 + $0x78] sm:$0xff]
        %v745 = vld [vmem:[%s7] sm:$0x3]
        %v747 = vperm.slane %v745, 0
        %v748 = vperm.slane %v745, 1
        %v767 = vunpack.c.l.b16 %v729
        %v768 = vunpack.c.h.b16 %v729
        %v769 = vunpack.c.l.b16 %v730
        %v770 = vunpack.c.h.b16 %v730
        %v771 = vunpack.c.l.b16 %v731
        %v772 = vunpack.c.h.b16 %v731
        %v773 = vunpack.c.l.b16 %v732
        %v774 = vunpack.c.h.b16 %v732
        %v775 = vunpack.c.l.b16 %v733
        %v776 = vunpack.c.h.b16 %v733
        %v777 = vunpack.c.l.b16 %v734
        %v778 = vunpack.c.h.b16 %v734
        %v779 = vunpack.c.l.b16 %v735
        %v780 = vunpack.c.h.b16 %v735
        %v781 = vunpack.c.l.b16 %v736
        %v782 = vunpack.c.h.b16 %v736
        %v783 = vunpack.c.l.b16 %v737
        %v784 = vunpack.c.h.b16 %v737
        %v785 = vunpack.c.l.b16 %v738
        %v786 = vunpack.c.h.b16 %v738
        %v787 = vunpack.c.l.b16 %v739
        %v788 = vunpack.c.h.b16 %v739
        %v789 = vunpack.c.l.b16 %v740
        %v790 = vunpack.c.h.b16 %v740
        %v791 = vunpack.c.l.b16 %v741
        %v792 = vunpack.c.h.b16 %v741
        %v793 = vunpack.c.l.b16 %v742
        %v794 = vunpack.c.h.b16 %v742
        %v795 = vunpack.c.l.b16 %v743
        %v796 = vunpack.c.h.b16 %v743
        %v797 = vunpack.c.l.b16 %v744
        %v798 = vunpack.c.h.b16 %v744
        %v799 = vpack.c.b16 %v769, %v767
        %v800 = vpack.c.b16 %v770, %v768
        %v801 = vpack.c.b16 %v773, %v771
        %v802 = vpack.c.b16 %v774, %v772
        %v803 = vpack.c.b16 %v777, %v775
        %v804 = vpack.c.b16 %v778, %v776
        %v805 = vpack.c.b16 %v781, %v779
        %v806 = vpack.c.b16 %v782, %v780
        %v807 = vpack.c.b16 %v785, %v783
        %v808 = vpack.c.b16 %v786, %v784
        %v809 = vpack.c.b16 %v789, %v787
        %v810 = vpack.c.b16 %v790, %v788
        %v811 = vpack.c.b16 %v793, %v791
        %v812 = vpack.c.b16 %v794, %v792
        %v813 = vpack.c.b16 %v797, %v795
        %v814 = vpack.c.b16 %v798, %v796
        %831 = vmatpush.bf16.msra.mxu0 %v813
        %832 = vmatpush.bf16.msra.mxu0 %v811
        %833 = vmatpush.bf16.msra.mxu0 %v809
        %834 = vmatpush.bf16.msra.mxu0 %v807
        %835 = vmatpush.bf16.msra.mxu0 %v805
        %836 = vmatpush.bf16.msra.mxu0 %v803
        %837 = vmatpush.bf16.msra.mxu0 %v801
        %838 = vmatpush.bf16.msra.mxu0 %v799
        %839 = vmatmul.bf16.gmra.mxu0 %v728
        %v840 = vpop.f32.mrf.mxu0
        %v841 = vadd.f32 %v747, %v840
        %v842 = vpop.f32.mrf.mxu0
        %v843 = vadd.f32 %v747, %v842
        %844 = vdwg.mxu0
        %845 = vmatpush.bf16.msra.mxu0 %v814
        %846 = vmatpush.bf16.msra.mxu0 %v812
        %847 = vmatpush.bf16.msra.mxu0 %v810
        %848 = vmatpush.bf16.msra.mxu0 %v808
        %849 = vmatpush.bf16.msra.mxu0 %v806
        %850 = vmatpush.bf16.msra.mxu0 %v804
        %851 = vmatpush.bf16.msra.mxu0 %v802
        %852 = vmatpush.bf16.msra.mxu0 %v800
        %853 = vmatmul.bf16.gmra.mxu0 %v728
        %v854 = vpop.f32.mrf.mxu0
        %v855 = vadd.f32 %v748, %v854
        %v856 = vpop.f32.mrf.mxu0
        %v857 = vadd.f32 %v748, %v856
        %858 = vdwg.mxu0
        %v859 = vmax.f32 %v841, 0.0
        %v860 = vmax.f32 %v855, 0.0
        %v861 = vmax.f32 %v843, 0.0
        %v862 = vmax.f32 %v857, 0.0
        %v863 = vpack.c.bf16 %v861, %v859
        %v864 = vpack.c.bf16 %v862, %v860
        %v865 = vld [vmem:[#allocation11] sm:$0xf]
        %v866 = vld [vmem:[#allocation11 + $0x4] sm:$0xf]
        %v867 = vld [vmem:[#allocation11 + $0x8] sm:$0xf]
        %v868 = vld [vmem:[#allocation11 + $0xc] sm:$0xf]
        %v869 = vld [vmem:[#allocation11 + $0x10] sm:$0xf]
        %v870 = vld [vmem:[#allocation11 + $0x14] sm:$0xf]
        %v871 = vld [vmem:[#allocation11 + $0x18] sm:$0xf]
        %v872 = vld [vmem:[#allocation11 + $0x1c] sm:$0xf]
        %v873 = vld [vmem:[#allocation11 + $0x20] sm:$0xf]
        %v874 = vld [vmem:[#allocation11 + $0x24] sm:$0xf]
        %v875 = vld [vmem:[#allocation11 + $0x28] sm:$0xf]
        %v876 = vld [vmem:[#allocation11 + $0x2c] sm:$0xf]
        %v877 = vld [vmem:[#allocation11 + $0x30] sm:$0xf]
        %v878 = vld [vmem:[#allocation11 + $0x34] sm:$0xf]
        %v879 = vld [vmem:[#allocation11 + $0x38] sm:$0xf]
        %v880 = vld [vmem:[#allocation11 + $0x3c] sm:$0xf]
        %v881 = vld [vmem:[#allocation11 + $0x40] sm:$0xf]
        %v882 = vld [vmem:[#allocation11 + $0x44] sm:$0xf]
        %v883 = vld [vmem:[#allocation11 + $0x48] sm:$0xf]
        %v884 = vld [vmem:[#allocation11 + $0x4c] sm:$0xf]
        %v885 = vld [vmem:[#allocation11 + $0x50] sm:$0xf]
        %v886 = vld [vmem:[#allocation11 + $0x54] sm:$0xf]
        %v887 = vld [vmem:[#allocation11 + $0x58] sm:$0xf]
        %v888 = vld [vmem:[#allocation11 + $0x5c] sm:$0xf]
        %v889 = vld [vmem:[#allocation11 + $0x60] sm:$0xf]
        %v890 = vld [vmem:[#allocation11 + $0x64] sm:$0xf]
        %v891 = vld [vmem:[#allocation11 + $0x68] sm:$0xf]
        %v892 = vld [vmem:[#allocation11 + $0x6c] sm:$0xf]
        %v893 = vld [vmem:[#allocation11 + $0x70] sm:$0xf]
        %v894 = vld [vmem:[#allocation11 + $0x74] sm:$0xf]
        %v895 = vld [vmem:[#allocation11 + $0x78] sm:$0xf]
        %v896 = vld [vmem:[#allocation11 + $0x7c] sm:$0xf]
        %v897 = vld [vmem:[#allocation13 + $0x6] sm:$0x1]
        %v898 = vperm.slane %v897, 0
        %v931 = vunpack.c.l.b16 %v865
        %v932 = vunpack.c.l.b16 %v866
        %v933 = vunpack.c.l.b16 %v867
        %v934 = vunpack.c.l.b16 %v868
        %v935 = vunpack.c.l.b16 %v869
        %v936 = vunpack.c.l.b16 %v870
        %v937 = vunpack.c.l.b16 %v871
        %v938 = vunpack.c.l.b16 %v872
        %v939 = vunpack.c.l.b16 %v873
        %v940 = vunpack.c.l.b16 %v874
        %v941 = vunpack.c.l.b16 %v875
        %v942 = vunpack.c.l.b16 %v876
        %v943 = vunpack.c.l.b16 %v877
        %v944 = vunpack.c.l.b16 %v878
        %v945 = vunpack.c.l.b16 %v879
        %v946 = vunpack.c.l.b16 %v880
        %v947 = vunpack.c.l.b16 %v881
        %v948 = vunpack.c.l.b16 %v882
        %v949 = vunpack.c.l.b16 %v883
        %v950 = vunpack.c.l.b16 %v884
        %v951 = vunpack.c.l.b16 %v885
        %v952 = vunpack.c.l.b16 %v886
        %v953 = vunpack.c.l.b16 %v887
        %v954 = vunpack.c.l.b16 %v888
        %v955 = vunpack.c.l.b16 %v889
        %v956 = vunpack.c.l.b16 %v890
        %v957 = vunpack.c.l.b16 %v891
        %v958 = vunpack.c.l.b16 %v892
        %v959 = vunpack.c.l.b16 %v893
        %v960 = vunpack.c.l.b16 %v894
        %v961 = vunpack.c.l.b16 %v895
        %v962 = vunpack.c.l.b16 %v896
        %v963 = vpack.c.b16 %v932, %v931
        %v964 = vpack.c.b16 %v934, %v933
        %v965 = vpack.c.b16 %v936, %v935
        %v966 = vpack.c.b16 %v938, %v937
        %v967 = vpack.c.b16 %v940, %v939
        %v968 = vpack.c.b16 %v942, %v941
        %v969 = vpack.c.b16 %v944, %v943
        %v970 = vpack.c.b16 %v946, %v945
        %v971 = vpack.c.b16 %v948, %v947
        %v972 = vpack.c.b16 %v950, %v949
        %v973 = vpack.c.b16 %v952, %v951
        %v974 = vpack.c.b16 %v954, %v953
        %v975 = vpack.c.b16 %v956, %v955
        %v976 = vpack.c.b16 %v958, %v957
        %v977 = vpack.c.b16 %v960, %v959
        %v978 = vpack.c.b16 %v962, %v961
        %995 = vmatpush.bf16.msra.mxu0 %v970
        %996 = vmatpush.bf16.msra.mxu0 %v969
        %997 = vmatpush.bf16.msra.mxu0 %v968
        %998 = vmatpush.bf16.msra.mxu0 %v967
        %999 = vmatpush.bf16.msra.mxu0 %v966
        %1000 = vmatpush.bf16.msra.mxu0 %v965
        %1001 = vmatpush.bf16.msra.mxu0 %v964
        %1002 = vmatpush.bf16.msra.mxu0 %v963
        %1003 = vmatmul.bf16.gmra.mxu0 %v863
        %v1004 = vpop.f32.mrf.mxu0
        %v1005 = vadd.f32 %v898, %v1004
        %v1006 = vpop.f32.mrf.mxu0
        %v1007 = vadd.f32 %v898, %v1006
        %1008 = vdwg.mxu0
        %1009 = vmatpush.bf16.msra.mxu0 %v978
        %1010 = vmatpush.bf16.msra.mxu0 %v977
        %1011 = vmatpush.bf16.msra.mxu0 %v976
        %1012 = vmatpush.bf16.msra.mxu0 %v975
        %1013 = vmatpush.bf16.msra.mxu0 %v974
        %1014 = vmatpush.bf16.msra.mxu0 %v973
        %1015 = vmatpush.bf16.msra.mxu0 %v972
        %1016 = vmatpush.bf16.msra.mxu0 %v971
        %1017 = vmatmul.bf16.gmra.mxu0 %v864
        %v1018 = vpop.f32.mrf.mxu0
        %v1019 = vadd.f32 %v1005, %v1018
        %v1020 = vpop.f32.mrf.mxu0
        %v1021 = vadd.f32 %v1007, %v1020
        %1022 = vdwg.mxu0
        %v1023 = vadd.f32 %v1019, %v726
        %v1024 = vadd.f32 %v1021, %v727
        %v1025 = vld [vmem:[#allocation13 + $0x4] sm:$0x1]
        %v1026 = vld [vmem:[#allocation13 + $0x5] sm:$0x1]
        %1027 = vadd.xlane.f32.xlu0 %v1023
        %v1028 = vpop.xlane.xlu0 %1027
        %1029 = vadd.xlane.f32.xlu0 %v1024
        %v1030 = vpop.xlane.xlu0 %1029
        %v1031 = vmul.f32 %v1028, %v551
        %v1032 = vmul.f32 %v1030, %v551
        %v1033 = vsub.f32 %v1023, %v1031
        %v1034 = vsub.f32 %v1024, %v1032
        %v1035 = vmul.f32 %v1033, %v1033
        %v1036 = vmul.f32 %v1034, %v1034
        %1037 = vadd.xlane.f32.xlu0 %v1035
        %v1038 = vpop.xlane.xlu0 %1037
        %1039 = vadd.xlane.f32.xlu0 %v1036
        %v1040 = vpop.xlane.xlu0 %1039
        %v1041 = vmul.f32 %v1038, %v551
        %v1042 = vmul.f32 %v1040, %v551
        %v1043 = vadd.f32 %v1041, 1e-05
        %v1044 = vadd.f32 %v1042, 1e-05
        %v1045 = vrsqrt.pop %v1043
        %v1046 = vmul.f32 %v1045, %v1043
        %v1047 = vmul.f32 %v1046, %v1045
        %v1048 = vmul.f32 0.5, %v1047
        %v1049 = vsub.f32 1.5, %v1048
        %v1050 = vmul.f32 %v1045, %v1049
        %vm1051 = vweird.f32 %v1043
        %vm1052 = vweird.f32 %v1045
        %vm1053 = vmor %vm1051, %vm1052
        %v1054 = vsel %vm1053, %v1045, %v1050
        %v1055 = vrsqrt.pop %v1044
        %v1056 = vmul.f32 %v1055, %v1044
        %v1057 = vmul.f32 %v1056, %v1055
        %v1058 = vmul.f32 0.5, %v1057
        %v1059 = vsub.f32 1.5, %v1058
        %v1060 = vmul.f32 %v1055, %v1059
        %vm1061 = vweird.f32 %v1044
        %vm1062 = vweird.f32 %v1055
        %vm1063 = vmor %vm1061, %vm1062
        %v1064 = vsel %vm1063, %v1055, %v1060
        %v1065 = vmul.f32 %v1033, %v1054
        %v1066 = vmul.f32 %v1034, %v1064
        %v1067 = vperm.slane %v1025, 0
        %v1068 = vmul.f32 %v1065, %v1067
        %v1069 = vmul.f32 %v1066, %v1067
        %v1070 = vperm.slane %v1026, 0
        %v1071 = vadd.f32 %v1068, %v1070
        %v1072 = vadd.f32 %v1069, %v1070
        %1073 = vst [vmem:[%s447] sm:$0xff] %v1071
        %1074 = vst [vmem:[%s447 + $0x8] sm:$0xff] %v1072
        %s1075 = sand.u32 %s216, 1
        %s1076 = scalar_lea.sflag [#allocation4], %s1075
        %s1077 = sand.u32 %s216, 1
        %s1078 = smul.addr %s1077, 16
        %s1079 = scalar_lea.vmem [#allocation14], %s1078
        // Predicated region
        $region81: #{tpu_custom_call.1} parent=51 // pred_check
          %p1080 = pneg %p226
        $region82: #{tpu_custom_call.1} parent=51 // pred_check_branch
          %1082 = sbr.rel (%p1080) target = $region84
        $region83: #{tpu_custom_call.1} parent=51 // pred_region
          %s1083 = smul.u32 2, %s30
          %1085 = vsyncadd %s1076, 0
          %s1086 = smul.addr %s1083, 8
          %s1087 = scalar_lea.hbm %s8, %s1086
          %s1088 = sshll.u32 %s1079, 4
          %s1089 = int_to_ptr.vmem [resolvable:$true] %s1088
          %s1090 = sshll.u32 %s1087, 4
          %s1091 = int_to_ptr.hbm [resolvable:$true] %s1090
          %1096 = dma.vmem_to_hbm [thread:$0]  %s1089, 256, %s1091, %s1076, 128, 128, 8
        $region84: #{tpu_custom_call.1} parent=51 // pred_fallthru
          _
      $region52: #{tpu_custom_call.1} parent=5 // pred_fallthru
        _
      %p1097 = scmp.le.s32.totalorder 2, %s25
      // Predicated region
      $region85: #{tpu_custom_call.1} parent=5 // pred_check
        %p1098 = pneg %p1097
      $region86: #{tpu_custom_call.1} parent=5 // pred_check_branch
        %1100 = sbr.rel (%p1098) target = $region88
      $region87: #{tpu_custom_call.1} parent=5 // pred_region
        %s1101 = ssub.s32 %s25, 2
        // Predicated region
        $region89: #{tpu_custom_call.1} parent=87 // pred_check
          %p1102 = pneg %p232
        $region90: #{tpu_custom_call.1} parent=87 // pred_check_branch
          %1104 = sbr.rel (%p1102) target = $region92
        $region91: #{tpu_custom_call.1} parent=87 // pred_region
          %s1105 = sand.u32 %s217, 1
          %s1106 = scalar_lea.sflag [#allocation4], %s1105
          %s1107 = sand.u32 %s217, 1
          %s1108 = smul.addr %s1107, 16
          %s1109 = scalar_lea.vmem [#allocation14], %s1108
          %1111 = dma.done %s1106, 256
        $region92: #{tpu_custom_call.1} parent=87 // pred_fallthru
          _
      $region88: #{tpu_custom_call.1} parent=5 // pred_fallthru
        _
    $region6: #{tpu_custom_call.1} parent=1 // loop_footer
      %s29 = sadd.s32 1, %s25
    $region7: #{tpu_custom_call.1} parent=1 // loop_footer_branch
      %24 = sbr.rel target = $region3
    $region8: #{tpu_custom_call.1} parent=1 // loop_exit
      _
    %1112 = vsyncpa [#allocation3], 1
    %s1113 = scalar_lea.sflag [#allocation3], 1
    %1114 = vsyncpa %s1113, 1
    %1115 = vsyncpa [#allocation6], 1
    %s1116 = scalar_lea.sflag [#allocation6], 1
    %1117 = vsyncpa %s1116, 1
    %1118 = vsyncpa [#allocation9], 1
    %1119 = vsyncpa [#allocation12], 1
    %1120 = vsyncpa [#allocation4], 1
    %s1121 = scalar_lea.sflag [#allocation4], 1
    %1122 = vsyncpa %s1121, 1

</llo_original>
